<compile_context>
chip_gen: v7x
topology: tpu7x:2x2x1
jax: 0.10.0
libtpu: 0.0.40
codegen_flags: <defaults>
</compile_context>

<pallas_src>
import functools
import math

import jax
import jax.numpy as jnp
import numpy as np
from jax.experimental import pallas as pl
from jax.experimental.pallas import tpu as pltpu


# ------------------------------ fused kernel ------------------------------

def _fused_autoencoder_kernel(x_ref, m1_ref, b1_ref, m2_ref, b2_ref,
                              d1_ref, bd1_ref, d2_ref, bd2_ref,
                              o_ref,
                              xp1_ref, a2p_ref, xp2_ref):
    nb = x_ref.shape[0]
    h = x_ref.shape[1] - 2                    # input block carries a 1-row halo
    k1 = x_ref.shape[2]                       # w * 3
    n1 = m1_ref.shape[-1]                     # w * c1, lanes ordered (x%2, x//2, c)
    half1 = n1 // 2                           # (w//2) * c1
    h2 = h // 2
    n2 = m2_ref.shape[-1]                     # (w//2) * latent
    half2 = n2 // 2                           # (w//4) * latent
    hq = h2 // 2
    r1, r2, r3 = nb * h, nb * h2, nb * hq

    # Zero only the 1-row halo of conv2's padded input scratch (2 thin stores,
    # done every step so a megacore grid split is still correct).
    zb = jnp.zeros((nb, 1, half1), jnp.float32)
    a2p_ref[:, pl.ds(0, 1), :] = zb
    a2p_ref[:, pl.ds(h2 + 1, 1), :] = zb

    # ---------------- conv1 (3x3, pad 1) + ReLU: 3 banded matmuls ----------------
    acc = jnp.dot(x_ref[:, pl.ds(0, h), :].reshape(r1, k1), m1_ref[0],
                  preferred_element_type=jnp.float32)
    acc = acc + jnp.dot(x_ref[:, pl.ds(1, h), :].reshape(r1, k1), m1_ref[1],
                        preferred_element_type=jnp.float32)
    acc = acc + jnp.dot(x_ref[:, pl.ds(2, h), :].reshape(r1, k1), m1_ref[2],
                        preferred_element_type=jnp.float32)
    o1 = jnp.maximum(acc + b1_ref[...], 0.0)                       # (nb*h, w*c1)

    # ---- 2x2 max-pool: x via contiguous lane halves, y via stride-2 sublane reads ----
    xp1_ref[...] = jnp.maximum(o1[:, :half1], o1[:, half1:])
    a2 = jnp.maximum(xp1_ref[pl.ds(0, r2, stride=2), :],
                     xp1_ref[pl.ds(1, r2, stride=2), :])           # (nb*h2, (w//2)*c1)

    # ---------------- conv2 (3x3, pad 1) + ReLU: 3 banded matmuls ----------------
    a2p_ref[:, pl.ds(1, h2), :] = a2.reshape(nb, h2, half1)
    acc2 = jnp.dot(a2p_ref[:, pl.ds(0, h2), :].reshape(r2, half1), m2_ref[0],
                   preferred_element_type=jnp.float32)
    acc2 = acc2 + jnp.dot(a2, m2_ref[1],                           # kh=1 tap == a2
                          preferred_element_type=jnp.float32)
    acc2 = acc2 + jnp.dot(a2p_ref[:, pl.ds(2, h2), :].reshape(r2, half1), m2_ref[2],
                          preferred_element_type=jnp.float32)
    o2 = jnp.maximum(acc2 + b2_ref[...], 0.0)                      # (nb*h2, (w//2)*lat)

    xp2_ref[...] = jnp.maximum(o2[:, :half2], o2[:, half2:])
    z = jnp.maximum(xp2_ref[pl.ds(0, r3, stride=2), :],
                    xp2_ref[pl.ds(1, r3, stride=2), :])            # (nb*hq, (w//4)*lat)

    # -------- decoder: both ConvTranspose2d layers as two batched matmuls --------
    h1 = jnp.maximum(jnp.dot(z, d1_ref[...], preferred_element_type=jnp.float32)
                     + bd1_ref[...], 0.0)                          # (nb*hq, wq*64)
    oo = jnp.dot(h1, d2_ref[...], preferred_element_type=jnp.float32) + bd2_ref[...]
    o_ref[...] = (1.0 / (1.0 + jnp.exp(-oo))).astype(o_ref.dtype)  # (nb*hq, wq*48)


# ------------------------ host-side weight packing ------------------------

def _banded_conv_matrices(w_hwio, width):
    """Per-kh banded matrices (width*Cin, width*Cout) for a 3x3 / pad-1 conv.

    Output lane order is (x%2, x//2, cout) so the 2x2 max-pool's x-reduction
    becomes an elementwise max of the two contiguous lane halves.
    """
    kh, kw, cin, cout = w_hwio.shape
    xi = jnp.arange(width)[:, None]
    xo = jnp.arange(width)[None, :]
    xo_order = jnp.concatenate([jnp.arange(0, width, 2), jnp.arange(1, width, 2)])
    mats = []
    for r in range(kh):
        m = jnp.zeros((width, cin, width, cout), w_hwio.dtype)
        for c in range(kw):
            sel = (xi == xo + (c - 1)).astype(w_hwio.dtype)        # band for this kw
            m = m + sel[:, None, :, None] * w_hwio[r, c][None, :, None, :]
        m = m[:, :, xo_order, :]                                   # (parity, half) lane order
        mats.append(m.reshape(width * cin, width * cout))
    return jnp.stack(mats, axis=0)                                 # (3, W*cin, W*cout)


# ----------------------------------- wrapper -----------------------------------

@functools.partial(jax.jit, static_argnames=("batch_block",))
def autoencoder_forward(x_nchw, params, batch_block=None):
    """Forward pass matching the PyTorch AutoEncoder. Input/output are NCHW."""
    n, cin, h, w = x_nchw.shape
    assert cin == 3, "encoder expects 3 input channels"
    assert h % 16 == 0 and w % 4 == 0, "need H % 16 == 0 and W % 4 == 0"

    c1 = params["conv1_w"].shape[-1]            # 16
    lat = params["conv2_w"].shape[-1]           # latent_channel_dim
    cout = params["tconv2_w"].shape[-1]         # 3
    hq, wq = h // 4, w // 4
    kpack = wq * 16 * cout                      # packed lane dim (>= 128)

    # NHWC with width folded into lanes + zero 1-row halo (conv1 needs no in-kernel pad).
    x = jnp.transpose(x_nchw, (0, 2, 3, 1)).astype(jnp.float32).reshape(n, h, w * cin)
    x = jnp.pad(x, ((0, 0), (1, 1), (0, 0)))

    # Batch blocking: ~32 images/step for 32x32 inputs (amortizes per-step overhead
    # on v5e/v6e) while staying well inside v7x's 64 MiB VMEM; nb*hq must be a
    # multiple of 8 so the packed 2-D output block is sublane-tile aligned.
    if batch_block is None:
        batch_block = max(1, min(n, 32768 // (h * w)))
    g = 8 // math.gcd(hq, 8)
    nb = max(g, (batch_block + g - 1) // g * g)
    npad = -(-n // nb) * nb
    if npad != n:
        x = jnp.pad(x, ((0, npad - n), (0, 0), (0, 0)))

    # ---- pack weights (tiny, traced once under jit) ----
    m1 = _banded_conv_matrices(params["conv1_w"], w)               # (3, w*3,  w*c1)
    b1v = jnp.tile(params["conv1_b"].reshape(1, c1), (1, w))
    m2 = _banded_conv_matrices(params["conv2_w"], w // 2)          # (3, w/2*c1, w/2*lat)
    b2v = jnp.tile(params["conv2_b"].reshape(1, lat), (1, w // 2))
    blk1 = params["tconv1_w"].transpose(2, 0, 1, 3).reshape(lat, 4 * c1)   # cols (dh,dw,c)
    d1 = jnp.kron(jnp.eye(wq, dtype=blk1.dtype), blk1)             # (wq*lat, wq*64)
    bd1 = jnp.tile(params["tconv1_b"].reshape(1, c1), (1, 4 * wq))
    blk2 = params["tconv2_w"].transpose(2, 0, 1, 3).reshape(c1, 4 * cout)  # cols (eh,ew,c)
    w2b = jnp.kron(jnp.eye(4, dtype=blk2.dtype), blk2)             # block-diag over (dh,dw)
    d2 = jnp.kron(jnp.eye(wq, dtype=w2b.dtype), w2b)               # (wq*64, wq*48)
    bd2 = jnp.tile(params["tconv2_b"].reshape(1, cout), (1, 16 * wq))

    out2d = pl.pallas_call(
        _fused_autoencoder_kernel,
        out_shape=jax.ShapeDtypeStruct((npad * hq, kpack), jnp.float32),
        grid_spec=pltpu.PrefetchScalarGridSpec(
            num_scalar_prefetch=0,
            grid=(npad // nb,),
            in_specs=[
                pl.BlockSpec((nb, h + 2, w * cin), lambda i: (i, 0, 0)),
                pl.BlockSpec(m1.shape, lambda i: (0, 0, 0)),
                pl.BlockSpec(b1v.shape, lambda i: (0, 0)),
                pl.BlockSpec(m2.shape, lambda i: (0, 0, 0)),
                pl.BlockSpec(b2v.shape, lambda i: (0, 0)),
                pl.BlockSpec(d1.shape, lambda i: (0, 0)),
                pl.BlockSpec(bd1.shape, lambda i: (0, 0)),
                pl.BlockSpec(d2.shape, lambda i: (0, 0)),
                pl.BlockSpec(bd2.shape, lambda i: (0, 0)),
            ],
            out_specs=pl.BlockSpec((nb * hq, kpack), lambda i: (i, 0)),
            scratch_shapes=[
                pltpu.VMEM((nb * h, (w // 2) * c1), jnp.float32),            # x-pooled conv1 out
                pltpu.VMEM((nb, h // 2 + 2, (w // 2) * c1), jnp.float32),    # row-padded conv2 in
                pltpu.VMEM((nb * (h // 2), (w // 4) * lat), jnp.float32),    # x-pooled conv2 out
            ],
        ),
        compiler_params=pltpu.CompilerParams(
            dimension_semantics=("parallel",),
            vmem_limit_bytes=64 * 1024 * 1024),
    )(x, m1, b1v, m2, b2v, d1, bd1, d2, bd2)

    # Unpack lanes (j, dh, dw, eh, ew, c) and go straight to NCHW with one transpose.
    t = out2d.reshape(npad, hq, wq, 2, 2, 2, 2, cout)[:n]
    t = t.transpose(0, 7, 1, 3, 5, 2, 4, 6)        # (n, c, i, dh, eh, j, dw, ew)
    return t.reshape(n, cout, h, w)


def init_params(key, latent_channel_dim):
    """Deterministic synthetic parameters. Conv weights stored as (kh, kw, Cin, Cout)."""
    ks = jax.random.split(key, 8)

    def u(k, shape, fan_in):
        bound = 1.0 / np.sqrt(fan_in)
        return jax.random.uniform(k, shape, jnp.float32, -bound, bound)

    L = latent_channel_dim
    return {
        "conv1_w": u(ks[0], (3, 3, 3, 16), 3 * 9),   "conv1_b": u(ks[1], (1, 16), 3 * 9),
        "conv2_w": u(ks[2], (3, 3, 16, L), 16 * 9),  "conv2_b": u(ks[3], (1, L), 16 * 9),
        "tconv1_w": u(ks[4], (2, 2, L, 16), L * 4),  "tconv1_b": u(ks[5], (1, 16), L * 4),
        "tconv2_w": u(ks[6], (2, 2, 16, 3), 16 * 4), "tconv2_b": u(ks[7], (1, 3), 16 * 4),
    }


# ----------------------------- pure-JAX reference ---------------------------

def reference_forward(x_nchw, params):
    x = jnp.transpose(x_nchw, (0, 2, 3, 1)).astype(jnp.float32)

    def conv(x, w, b):
        y = jax.lax.conv_general_dilated(
            x, w, (1, 1), "SAME", dimension_numbers=("NHWC", "HWIO", "NHWC"))
        return jax.nn.relu(y + b.reshape(1, 1, 1, -1))

    def pool(x):
        return jax.lax.reduce_window(x, -jnp.inf, jax.lax.max,
                                     (1, 2, 2, 1), (1, 2, 2, 1), "VALID")

    def tconv(x, w, b, act):
        N, H, W, _ = x.shape
        Cout = w.shape[-1]
        y = jnp.einsum("nijc,klcd->nikjld", x, w).reshape(N, 2 * H, 2 * W, Cout)
        return act(y + b.reshape(1, 1, 1, -1))

    x = pool(conv(x, params["conv1_w"], params["conv1_b"]))
    x = pool(conv(x, params["conv2_w"], params["conv2_b"]))
    x = tconv(x, params["tconv1_w"], params["tconv1_b"], jax.nn.relu)
    x = tconv(x, params["tconv2_w"], params["tconv2_b"], jax.nn.sigmoid)
    return jnp.transpose(x, (0, 3, 1, 2))


# ----------------------------------- main -----------------------------------

if __name__ == "__main__":
    key = jax.random.PRNGKey(0)
    k_x, k_p = jax.random.split(key)

    latent_channel_dim = 4
    x = jax.random.uniform(k_x, (2, 3, 16, 16), jnp.float32)   # NCHW, small CIFAR-like
    params = init_params(k_p, latent_channel_dim)

    out = jax.block_until_ready(autoencoder_forward(x, params))
    assert out.shape == (2, 3, 16, 16) and out.dtype == jnp.float32

    ref = jax.block_until_ready(reference_forward(x, params))
    np.testing.assert_allclose(np.asarray(out), np.asarray(ref), rtol=1e-4, atol=1e-4)

    print("KERNEL_OK")
</pallas_src>

<mosaic_0001>
module attributes {stable_mosaic.version = 11 : i64} {
  func.func @_fused_autoencoder_kernel(%arg0: i32, %arg1: memref<2x18x48xf32, #tpu.memory_space<vmem>>, %arg2: memref<3x48x256xf32, #tpu.memory_space<vmem>>, %arg3: memref<1x256xf32, #tpu.memory_space<vmem>>, %arg4: memref<3x128x32xf32, #tpu.memory_space<vmem>>, %arg5: memref<1x32xf32, #tpu.memory_space<vmem>>, %arg6: memref<16x256xf32, #tpu.memory_space<vmem>>, %arg7: memref<1x256xf32, #tpu.memory_space<vmem>>, %arg8: memref<256x192xf32, #tpu.memory_space<vmem>>, %arg9: memref<1x192xf32, #tpu.memory_space<vmem>>, %arg10: memref<8x192xf32, #tpu.memory_space<vmem>>, %arg11: memref<32x128xf32, #tpu.memory_space<vmem>>, %arg12: memref<2x10x128xf32, #tpu.memory_space<vmem>>, %arg13: memref<16x16xf32, #tpu.memory_space<vmem>>) attributes {dimension_semantics = [#tpu.dimension_semantics<parallel>], iteration_bounds = array<i64: 1>, scalar_prefetch = 0 : i64, scratch_operands = 3 : i64, tpu.core_type = #tpu.core_type<tc>, window_params = [{transform_indices = @transform_0, window_bounds = array<i64: 2, 18, 48>}, {pipeline_mode = #tpu.pipeline_mode<synchronous>, transform_indices = @transform_1, window_bounds = array<i64: 3, 48, 256>}, {pipeline_mode = #tpu.pipeline_mode<synchronous>, transform_indices = @transform_2, window_bounds = array<i64: 1, 256>}, {pipeline_mode = #tpu.pipeline_mode<synchronous>, transform_indices = @transform_3, window_bounds = array<i64: 3, 128, 32>}, {pipeline_mode = #tpu.pipeline_mode<synchronous>, transform_indices = @transform_4, window_bounds = array<i64: 1, 32>}, {pipeline_mode = #tpu.pipeline_mode<synchronous>, transform_indices = @transform_5, window_bounds = array<i64: 16, 256>}, {pipeline_mode = #tpu.pipeline_mode<synchronous>, transform_indices = @transform_6, window_bounds = array<i64: 1, 256>}, {pipeline_mode = #tpu.pipeline_mode<synchronous>, transform_indices = @transform_7, window_bounds = array<i64: 256, 192>}, {pipeline_mode = #tpu.pipeline_mode<synchronous>, transform_indices = @transform_8, window_bounds = array<i64: 1, 192>}, {transform_indices = @transform_9, window_bounds = array<i64: 8, 192>}]} {
    %cst = arith.constant 0.000000e+00 : f32
    %0 = vector.broadcast %cst : f32 to vector<2x1x128xf32>
    %c0 = arith.constant 0 : index
    %c0_0 = arith.constant 0 : index
    %c0_1 = arith.constant 0 : index
    %1 = vector.load %arg12[%c0, %c0_0, %c0_1] : memref<2x10x128xf32, #tpu.memory_space<vmem>>, vector<2x1x128xf32>
    tpu.vector_store %arg12[%c0, %c0_0, %c0_1], %0 {strides = array<i32>} : memref<2x10x128xf32, #tpu.memory_space<vmem>>, vector<2x1x128xf32>,
    %c0_2 = arith.constant 0 : index
    %c9 = arith.constant 9 : index
    %c0_3 = arith.constant 0 : index
    %2 = vector.load %arg12[%c0_2, %c9, %c0_3] : memref<2x10x128xf32, #tpu.memory_space<vmem>>, vector<2x1x128xf32>
    tpu.vector_store %arg12[%c0_2, %c9, %c0_3], %0 {strides = array<i32>} : memref<2x10x128xf32, #tpu.memory_space<vmem>>, vector<2x1x128xf32>,
    %c0_4 = arith.constant 0 : index
    %c0_5 = arith.constant 0 : index
    %c0_6 = arith.constant 0 : index
    %3 = vector.load %arg1[%c0_4, %c0_5, %c0_6] : memref<2x18x48xf32, #tpu.memory_space<vmem>>, vector<2x16x48xf32>
    %4 = vector.shape_cast %3 : vector<2x16x48xf32> to vector<32x48xf32>
    %c0_7 = arith.constant 0 : index
    %c0_8 = arith.constant 0 : index
    %c0_9 = arith.constant 0 : index
    %5 = vector.load %arg2[%c0_7, %c0_8, %c0_9] : memref<3x48x256xf32, #tpu.memory_space<vmem>>, vector<1x48x256xf32>
    %6 = vector.shape_cast %5 : vector<1x48x256xf32> to vector<48x256xf32>
    %cst_10 = arith.constant dense<0.000000e+00> : vector<32x256xf32>
    %7 = tpu.matmul %4, %6, %cst_10 {dimension_numbers = #tpu.dot_dimension_numbers<[1], [0], [0], [1], [0, 0, 1, 1], [], []>} : vector<32x48xf32>, vector<48x256xf32>, vector<32x256xf32> -> vector<32x256xf32>
    %c0_11 = arith.constant 0 : index
    %c1 = arith.constant 1 : index
    %c0_12 = arith.constant 0 : index
    %8 = vector.load %arg1[%c0_11, %c1, %c0_12] : memref<2x18x48xf32, #tpu.memory_space<vmem>>, vector<2x16x48xf32>
    %9 = vector.shape_cast %8 : vector<2x16x48xf32> to vector<32x48xf32>
    %c1_13 = arith.constant 1 : index
    %c0_14 = arith.constant 0 : index
    %c0_15 = arith.constant 0 : index
    %10 = vector.load %arg2[%c1_13, %c0_14, %c0_15] : memref<3x48x256xf32, #tpu.memory_space<vmem>>, vector<1x48x256xf32>
    %11 = vector.shape_cast %10 : vector<1x48x256xf32> to vector<48x256xf32>
    %cst_16 = arith.constant dense<0.000000e+00> : vector<32x256xf32>
    %12 = tpu.matmul %9, %11, %cst_16 {dimension_numbers = #tpu.dot_dimension_numbers<[1], [0], [0], [1], [0, 0, 1, 1], [], []>} : vector<32x48xf32>, vector<48x256xf32>, vector<32x256xf32> -> vector<32x256xf32>
    %13 = arith.addf %7, %12 : vector<32x256xf32>
    %c0_17 = arith.constant 0 : index
    %c2 = arith.constant 2 : index
    %c0_18 = arith.constant 0 : index
    %14 = vector.load %arg1[%c0_17, %c2, %c0_18] : memref<2x18x48xf32, #tpu.memory_space<vmem>>, vector<2x16x48xf32>
    %15 = vector.shape_cast %14 : vector<2x16x48xf32> to vector<32x48xf32>
    %c2_19 = arith.constant 2 : index
    %c0_20 = arith.constant 0 : index
    %c0_21 = arith.constant 0 : index
    %16 = vector.load %arg2[%c2_19, %c0_20, %c0_21] : memref<3x48x256xf32, #tpu.memory_space<vmem>>, vector<1x48x256xf32>
    %17 = vector.shape_cast %16 : vector<1x48x256xf32> to vector<48x256xf32>
    %cst_22 = arith.constant dense<0.000000e+00> : vector<32x256xf32>
    %18 = tpu.matmul %15, %17, %cst_22 {dimension_numbers = #tpu.dot_dimension_numbers<[1], [0], [0], [1], [0, 0, 1, 1], [], []>} : vector<32x48xf32>, vector<48x256xf32>, vector<32x256xf32> -> vector<32x256xf32>
    %19 = arith.addf %13, %18 : vector<32x256xf32>
    %c0_23 = arith.constant 0 : index
    %c0_24 = arith.constant 0 : index
    %20 = vector.load %arg3[%c0_23, %c0_24] : memref<1x256xf32, #tpu.memory_space<vmem>>, vector<1x256xf32>
    %21 = vector.broadcast %20 : vector<1x256xf32> to vector<32x256xf32>
    %22 = arith.addf %19, %21 : vector<32x256xf32>
    %cst_25 = arith.constant 0.000000e+00 : f32
    %23 = vector.broadcast %cst_25 : f32 to vector<32x256xf32>
    %24 = arith.maximumf %22, %23 : vector<32x256xf32>
    %25 = vector.extract_strided_slice %24 {offsets = [0, 0], sizes = [32, 128], strides = [1, 1]} : vector<32x256xf32> to vector<32x128xf32>
    %26 = vector.extract_strided_slice %24 {offsets = [0, 128], sizes = [32, 128], strides = [1, 1]} : vector<32x256xf32> to vector<32x128xf32>
    %27 = arith.maximumf %25, %26 : vector<32x128xf32>
    %c0_26 = arith.constant 0 : index
    %c0_27 = arith.constant 0 : index
    %28 = vector.load %arg11[%c0_26, %c0_27] : memref<32x128xf32, #tpu.memory_space<vmem>>, vector<32x128xf32>
    tpu.vector_store %arg11[%c0_26, %c0_27], %27 {strides = array<i32>} : memref<32x128xf32, #tpu.memory_space<vmem>>, vector<32x128xf32>,
    %c0_28 = arith.constant 0 : index
    %c0_29 = arith.constant 0 : index
    %29 = tpu.strided_load %arg11[%c0_28, %c0_29] {strides = array<i32: 2, 1>} : memref<32x128xf32, #tpu.memory_space<vmem>>, vector<16x128xf32>
    %c1_30 = arith.constant 1 : index
    %c0_31 = arith.constant 0 : index
    %30 = tpu.strided_load %arg11[%c1_30, %c0_31] {strides = array<i32: 2, 1>} : memref<32x128xf32, #tpu.memory_space<vmem>>, vector<16x128xf32>
    %31 = arith.maximumf %29, %30 : vector<16x128xf32>
    %32 = vector.shape_cast %31 : vector<16x128xf32> to vector<2x8x128xf32>
    %c0_32 = arith.constant 0 : index
    %c1_33 = arith.constant 1 : index
    %c0_34 = arith.constant 0 : index
    %33 = vector.load %arg12[%c0_32, %c1_33, %c0_34] : memref<2x10x128xf32, #tpu.memory_space<vmem>>, vector<2x8x128xf32>
    tpu.vector_store %arg12[%c0_32, %c1_33, %c0_34], %32 {strides = array<i32>} : memref<2x10x128xf32, #tpu.memory_space<vmem>>, vector<2x8x128xf32>,
    %c0_35 = arith.constant 0 : index
    %c0_36 = arith.constant 0 : index
    %c0_37 = arith.constant 0 : index
    %34 = vector.load %arg12[%c0_35, %c0_36, %c0_37] : memref<2x10x128xf32, #tpu.memory_space<vmem>>, vector<2x8x128xf32>
    %35 = vector.shape_cast %34 : vector<2x8x128xf32> to vector<16x128xf32>
    %c0_38 = arith.constant 0 : index
    %c0_39 = arith.constant 0 : index
    %c0_40 = arith.constant 0 : index
    %36 = vector.load %arg4[%c0_38, %c0_39, %c0_40] : memref<3x128x32xf32, #tpu.memory_space<vmem>>, vector<1x128x32xf32>
    %37 = vector.shape_cast %36 : vector<1x128x32xf32> to vector<128x32xf32>
    %cst_41 = arith.constant dense<0.000000e+00> : vector<16x32xf32>
    %38 = tpu.matmul %35, %37, %cst_41 {dimension_numbers = #tpu.dot_dimension_numbers<[1], [0], [0], [1], [0, 0, 1, 1], [], []>} : vector<16x128xf32>, vector<128x32xf32>, vector<16x32xf32> -> vector<16x32xf32>
    %c1_42 = arith.constant 1 : index
    %c0_43 = arith.constant 0 : index
    %c0_44 = arith.constant 0 : index
    %39 = vector.load %arg4[%c1_42, %c0_43, %c0_44] : memref<3x128x32xf32, #tpu.memory_space<vmem>>, vector<1x128x32xf32>
    %40 = vector.shape_cast %39 : vector<1x128x32xf32> to vector<128x32xf32>
    %cst_45 = arith.constant dense<0.000000e+00> : vector<16x32xf32>
    %41 = tpu.matmul %31, %40, %cst_45 {dimension_numbers = #tpu.dot_dimension_numbers<[1], [0], [0], [1], [0, 0, 1, 1], [], []>} : vector<16x128xf32>, vector<128x32xf32>, vector<16x32xf32> -> vector<16x32xf32>
    %42 = arith.addf %38, %41 : vector<16x32xf32>
    %c0_46 = arith.constant 0 : index
    %c2_47 = arith.constant 2 : index
    %c0_48 = arith.constant 0 : index
    %43 = vector.load %arg12[%c0_46, %c2_47, %c0_48] : memref<2x10x128xf32, #tpu.memory_space<vmem>>, vector<2x8x128xf32>
    %44 = vector.shape_cast %43 : vector<2x8x128xf32> to vector<16x128xf32>
    %c2_49 = arith.constant 2 : index
    %c0_50 = arith.constant 0 : index
    %c0_51 = arith.constant 0 : index
    %45 = vector.load %arg4[%c2_49, %c0_50, %c0_51] : memref<3x128x32xf32, #tpu.memory_space<vmem>>, vector<1x128x32xf32>
    %46 = vector.shape_cast %45 : vector<1x128x32xf32> to vector<128x32xf32>
    %cst_52 = arith.constant dense<0.000000e+00> : vector<16x32xf32>
    %47 = tpu.matmul %44, %46, %cst_52 {dimension_numbers = #tpu.dot_dimension_numbers<[1], [0], [0], [1], [0, 0, 1, 1], [], []>} : vector<16x128xf32>, vector<128x32xf32>, vector<16x32xf32> -> vector<16x32xf32>
    %48 = arith.addf %42, %47 : vector<16x32xf32>
    %c0_53 = arith.constant 0 : index
    %c0_54 = arith.constant 0 : index
    %49 = vector.load %arg5[%c0_53, %c0_54] : memref<1x32xf32, #tpu.memory_space<vmem>>, vector<1x32xf32>
    %50 = vector.broadcast %49 : vector<1x32xf32> to vector<16x32xf32>
    %51 = arith.addf %48, %50 : vector<16x32xf32>
    %cst_55 = arith.constant 0.000000e+00 : f32
    %52 = vector.broadcast %cst_55 : f32 to vector<16x32xf32>
    %53 = arith.maximumf %51, %52 : vector<16x32xf32>
    %54 = vector.extract_strided_slice %53 {offsets = [0, 0], sizes = [16, 16], strides = [1, 1]} : vector<16x32xf32> to vector<16x16xf32>
    %55 = vector.extract_strided_slice %53 {offsets = [0, 16], sizes = [16, 16], strides = [1, 1]} : vector<16x32xf32> to vector<16x16xf32>
    %56 = arith.maximumf %54, %55 : vector<16x16xf32>
    %c0_56 = arith.constant 0 : index
    %c0_57 = arith.constant 0 : index
    %57 = vector.load %arg13[%c0_56, %c0_57] : memref<16x16xf32, #tpu.memory_space<vmem>>, vector<16x16xf32>
    tpu.vector_store %arg13[%c0_56, %c0_57], %56 {strides = array<i32>} : memref<16x16xf32, #tpu.memory_space<vmem>>, vector<16x16xf32>,
    %c0_58 = arith.constant 0 : index
    %c0_59 = arith.constant 0 : index
    %58 = tpu.strided_load %arg13[%c0_58, %c0_59] {strides = array<i32: 2, 1>} : memref<16x16xf32, #tpu.memory_space<vmem>>, vector<8x16xf32>
    %c1_60 = arith.constant 1 : index
    %c0_61 = arith.constant 0 : index
    %59 = tpu.strided_load %arg13[%c1_60, %c0_61] {strides = array<i32: 2, 1>} : memref<16x16xf32, #tpu.memory_space<vmem>>, vector<8x16xf32>
    %60 = arith.maximumf %58, %59 : vector<8x16xf32>
    %c0_62 = arith.constant 0 : index
    %c0_63 = arith.constant 0 : index
    %61 = vector.load %arg6[%c0_62, %c0_63] : memref<16x256xf32, #tpu.memory_space<vmem>>, vector<16x256xf32>
    %cst_64 = arith.constant dense<0.000000e+00> : vector<8x256xf32>
    %62 = tpu.matmul %60, %61, %cst_64 {dimension_numbers = #tpu.dot_dimension_numbers<[1], [0], [0], [1], [0, 0, 1, 1], [], []>} : vector<8x16xf32>, vector<16x256xf32>, vector<8x256xf32> -> vector<8x256xf32>
    %c0_65 = arith.constant 0 : index
    %c0_66 = arith.constant 0 : index
    %63 = vector.load %arg7[%c0_65, %c0_66] : memref<1x256xf32, #tpu.memory_space<vmem>>, vector<1x256xf32>
    %64 = vector.broadcast %63 : vector<1x256xf32> to vector<8x256xf32>
    %65 = arith.addf %62, %64 : vector<8x256xf32>
    %cst_67 = arith.constant 0.000000e+00 : f32
    %66 = vector.broadcast %cst_67 : f32 to vector<8x256xf32>
    %67 = arith.maximumf %65, %66 : vector<8x256xf32>
    %c0_68 = arith.constant 0 : index
    %c0_69 = arith.constant 0 : index
    %68 = vector.load %arg8[%c0_68, %c0_69] : memref<256x192xf32, #tpu.memory_space<vmem>>, vector<256x192xf32>
    %cst_70 = arith.constant dense<0.000000e+00> : vector<8x192xf32>
    %69 = tpu.matmul %67, %68, %cst_70 {dimension_numbers = #tpu.dot_dimension_numbers<[1], [0], [0], [1], [0, 0, 1, 1], [], []>} : vector<8x256xf32>, vector<256x192xf32>, vector<8x192xf32> -> vector<8x192xf32>
    %c0_71 = arith.constant 0 : index
    %c0_72 = arith.constant 0 : index
    %70 = vector.load %arg9[%c0_71, %c0_72] : memref<1x192xf32, #tpu.memory_space<vmem>>, vector<1x192xf32>
    %71 = vector.broadcast %70 : vector<1x192xf32> to vector<8x192xf32>
    %72 = arith.addf %69, %71 : vector<8x192xf32>
    %cst_73 = arith.constant 0.000000e+00 : f32
    %73 = vector.broadcast %cst_73 : f32 to vector<8x192xf32>
    %74 = arith.subf %73, %72 : vector<8x192xf32>
    %75 = math.exp %74 : vector<8x192xf32>
    %cst_74 = arith.constant 1.000000e+00 : f32
    %76 = vector.broadcast %cst_74 : f32 to vector<8x192xf32>
    %77 = arith.addf %76, %75 : vector<8x192xf32>
    %cst_75 = arith.constant 1.000000e+00 : f32
    %78 = vector.broadcast %cst_75 : f32 to vector<8x192xf32>
    %79 = arith.divf %78, %77 : vector<8x192xf32>
    %c0_76 = arith.constant 0 : index
    %c0_77 = arith.constant 0 : index
    %80 = vector.load %arg10[%c0_76, %c0_77] : memref<8x192xf32, #tpu.memory_space<vmem>>, vector<8x192xf32>
    tpu.vector_store %arg10[%c0_76, %c0_77], %79 {strides = array<i32>} : memref<8x192xf32, #tpu.memory_space<vmem>>, vector<8x192xf32>,
    return
  }
  func.func @transform_0(%arg0: i32) -> (i32, i32, i32) {
    %c0_i32 = arith.constant 0 : i32
    %c0_i32_0 = arith.constant 0 : i32
    %c0_i32_1 = arith.constant 0 : i32
    return %arg0, %c0_i32, %c0_i32_0 : i32, i32, i32
  }
  func.func @transform_1(%arg0: i32) -> (i32, i32, i32) {
    %c0_i32 = arith.constant 0 : i32
    %c0_i32_0 = arith.constant 0 : i32
    %c0_i32_1 = arith.constant 0 : i32
    %c0_i32_2 = arith.constant 0 : i32
    return %c0_i32, %c0_i32_0, %c0_i32_1 : i32, i32, i32
  }
  func.func @transform_2(%arg0: i32) -> (i32, i32) {
    %c0_i32 = arith.constant 0 : i32
    %c0_i32_0 = arith.constant 0 : i32
    %c0_i32_1 = arith.constant 0 : i32
    return %c0_i32, %c0_i32_0 : i32, i32
  }
  func.func @transform_3(%arg0: i32) -> (i32, i32, i32) {
    %c0_i32 = arith.constant 0 : i32
    %c0_i32_0 = arith.constant 0 : i32
    %c0_i32_1 = arith.constant 0 : i32
    %c0_i32_2 = arith.constant 0 : i32
    return %c0_i32, %c0_i32_0, %c0_i32_1 : i32, i32, i32
  }
  func.func @transform_4(%arg0: i32) -> (i32, i32) {
    %c0_i32 = arith.constant 0 : i32
    %c0_i32_0 = arith.constant 0 : i32
    %c0_i32_1 = arith.constant 0 : i32
    return %c0_i32, %c0_i32_0 : i32, i32
  }
  func.func @transform_5(%arg0: i32) -> (i32, i32) {
    %c0_i32 = arith.constant 0 : i32
    %c0_i32_0 = arith.constant 0 : i32
    %c0_i32_1 = arith.constant 0 : i32
    return %c0_i32, %c0_i32_0 : i32, i32
  }
  func.func @transform_6(%arg0: i32) -> (i32, i32) {
    %c0_i32 = arith.constant 0 : i32
    %c0_i32_0 = arith.constant 0 : i32
    %c0_i32_1 = arith.constant 0 : i32
    return %c0_i32, %c0_i32_0 : i32, i32
  }
  func.func @transform_7(%arg0: i32) -> (i32, i32) {
    %c0_i32 = arith.constant 0 : i32
    %c0_i32_0 = arith.constant 0 : i32
    %c0_i32_1 = arith.constant 0 : i32
    return %c0_i32, %c0_i32_0 : i32, i32
  }
  func.func @transform_8(%arg0: i32) -> (i32, i32) {
    %c0_i32 = arith.constant 0 : i32
    %c0_i32_0 = arith.constant 0 : i32
    %c0_i32_1 = arith.constant 0 : i32
    return %c0_i32, %c0_i32_0 : i32, i32
  }
  func.func @transform_9(%arg0: i32) -> (i32, i32) {
    %c0_i32 = arith.constant 0 : i32
    %c0_i32_0 = arith.constant 0 : i32
    return %arg0, %c0_i32 : i32, i32
  }
}

</mosaic_0001>

<llo_original>
// kernel: mul.11
$region0: #{mul.11}
  %s0 = inlined_call_operand.vmem [shape: f32[16,2,2,3], index: 0, kind: input, shape index: {}]
  %s1 = inlined_call_operand.vmem [shape: f32[16,12], index: 1, kind: output, shape index: {}]
  $region1: #{mul.11} parent=0
    #allocation0 [shape = 'u8[16384]{0}', space=vmem, size = 0x4000, scoped, tag = 'scoped mem for input reshape']
    %s3 = sshllo.u32 0, 4
    %s4 = smul.addr 4, 3
    %s5 = scalar_lea.vmem %s0, %s4
    %v6 = vld [vmem:[%s5] sm:%s3]
    %s7 = scalar_lea.vmem [#allocation0], 24
    %8 = vst [vmem:[%s7] sm:%s3] %v6
    %s9 = smul.addr 4, 2
    %s10 = scalar_lea.vmem %s0, %s9
    %v11 = vld [vmem:[%s10] sm:%s3]
    %s12 = scalar_lea.vmem [#allocation0], 16
    %13 = vst [vmem:[%s12] sm:%s3] %v11
    %s14 = scalar_lea.vmem %s0, 4
    %v15 = vld [vmem:[%s14] sm:%s3]
    %s16 = scalar_lea.vmem [#allocation0], 8
    %17 = vst [vmem:[%s16] sm:%s3] %v15
    %v18 = vld [vmem:[%s0] sm:%s3]
    %19 = vst [vmem:[#allocation0] sm:%s3] %v18
    %v20 = vld [vmem:[#allocation0] sm:$0x7]
    %vm21 = vcmask 130048
    %22 = vst.msk [vmem:[%s1] sm:$0x7] %vm21, %v20
    %s23 = scalar_lea.vmem [#allocation0], 8
    %v24 = vld [vmem:[%s23] sm:$0x7]
    %vm25 = vcmask 130048
    %s26 = scalar_lea.vmem %s1, 3
    %27 = vst.msk [vmem:[%s26] sm:$0x7] %vm25, %v24
    %s28 = scalar_lea.vmem [#allocation0], 16
    %v29 = vld [vmem:[%s28] sm:$0x7]
    %vm30 = vcmask 130048
    %s31 = scalar_lea.vmem %s1, 6
    %32 = vst.msk [vmem:[%s31] sm:$0x7] %vm30, %v29
    %s33 = scalar_lea.vmem [#allocation0], 24
    %v34 = vld [vmem:[%s33] sm:$0x7]
    %vm35 = vcmask 130048
    %s36 = scalar_lea.vmem %s1, 9
    %37 = vst.msk [vmem:[%s36] sm:$0x7] %vm35, %v34

// kernel: mul.4
$region0: #{mul.4}
  %s0 = inlined_call_operand.vmem [shape: f32[4,2,2,16], index: 0, kind: input, shape index: {}]
  %s1 = inlined_call_operand.vmem [shape: f32[4,64], index: 1, kind: output, shape index: {}]
  $region1: #{mul.4} parent=0
    #allocation0 [shape = 'u8[4096]{0}', space=vmem, size = 0x1000, scoped, tag = 'scoped mem for output reshape']
    #allocation1 [shape = 'u8[32768]{0}', space=vmem, size = 0x8000, scoped, tag = 'scoped mem for input reshape']
    %s3 = sshllo.u32 0, 2
    %s4 = smul.addr 2, 7
    %s5 = scalar_lea.vmem %s0, %s4
    %v6 = vld [vmem:[%s5] sm:%s3]
    %s7 = scalar_lea.vmem [#allocation1], 56
    %8 = vst [vmem:[%s7] sm:%s3] %v6
    %s9 = smul.addr 2, 6
    %s10 = scalar_lea.vmem %s0, %s9
    %v11 = vld [vmem:[%s10] sm:%s3]
    %s12 = scalar_lea.vmem [#allocation1], 48
    %13 = vst [vmem:[%s12] sm:%s3] %v11
    %s14 = smul.addr 2, 5
    %s15 = scalar_lea.vmem %s0, %s14
    %v16 = vld [vmem:[%s15] sm:%s3]
    %s17 = scalar_lea.vmem [#allocation1], 40
    %18 = vst [vmem:[%s17] sm:%s3] %v16
    %s19 = smul.addr 2, 4
    %s20 = scalar_lea.vmem %s0, %s19
    %v21 = vld [vmem:[%s20] sm:%s3]
    %s22 = scalar_lea.vmem [#allocation1], 32
    %23 = vst [vmem:[%s22] sm:%s3] %v21
    %s24 = smul.addr 2, 3
    %s25 = scalar_lea.vmem %s0, %s24
    %v26 = vld [vmem:[%s25] sm:%s3]
    %s27 = scalar_lea.vmem [#allocation1], 24
    %28 = vst [vmem:[%s27] sm:%s3] %v26
    %s29 = smul.addr 2, 2
    %s30 = scalar_lea.vmem %s0, %s29
    %v31 = vld [vmem:[%s30] sm:%s3]
    %s32 = scalar_lea.vmem [#allocation1], 16
    %33 = vst [vmem:[%s32] sm:%s3] %v31
    %s34 = scalar_lea.vmem %s0, 2
    %v35 = vld [vmem:[%s34] sm:%s3]
    %s36 = scalar_lea.vmem [#allocation1], 8
    %37 = vst [vmem:[%s36] sm:%s3] %v35
    %v38 = vld [vmem:[%s0] sm:%s3]
    %39 = vst [vmem:[#allocation1] sm:%s3] %v38
    %s40 = smov 3
    %v41 = vld [vmem:[#allocation1] ss:$16 sm:%s40]
    %s42 = smov 12
    %v43 = vld [vmem:[#allocation1] ss:$16 sm:%s42]
    %vm44 = vcmask 1043458
    %v45 = vsel %vm44, %v43, %v41
    %vm46 = vcmask 130048
    %47 = vst.msk [vmem:[#allocation0] sm:$0xf] %vm46, %v45
    %s48 = scalar_lea.vmem [#allocation1], 9
    %s49 = smov 3
    %v50 = vld [vmem:[%s48] ss:$16 sm:%s49]
    %s51 = scalar_lea.vmem [#allocation1], 9
    %s52 = smov 12
    %v53 = vld [vmem:[%s51] ss:$16 sm:%s52]
    %vm54 = vcmask 1043458
    %v55 = vsel %vm54, %v53, %v50
    %56 = vrot.lane.b32.xlu0 %v55, 48
    %v57 = vpop.permute.xlu0 %56
    %vm58 = vcmask 523648
    %59 = vst.msk [vmem:[#allocation0] sm:$0xf] %vm58, %v57
    %s60 = scalar_lea.vmem [#allocation1], 8
    %s61 = smov 3
    %v62 = vld [vmem:[%s60] ss:$16 sm:%s61]
    %s63 = scalar_lea.vmem [#allocation1], 8
    %s64 = smov 12
    %v65 = vld [vmem:[%s63] ss:$16 sm:%s64]
    %vm66 = vcmask 1043458
    %v67 = vsel %vm66, %v65, %v62
    %68 = vrot.lane.b32.xlu0 %v67, 32
    %v69 = vpop.permute.xlu0 %68
    %vm70 = vcmask 392448
    %71 = vst.msk [vmem:[#allocation0] sm:$0xf] %vm70, %v69
    %s72 = scalar_lea.vmem [#allocation1], 1
    %s73 = smov 3
    %v74 = vld [vmem:[%s72] ss:$16 sm:%s73]
    %s75 = scalar_lea.vmem [#allocation1], 1
    %s76 = smov 12
    %v77 = vld [vmem:[%s75] ss:$16 sm:%s76]
    %vm78 = vcmask 1043458
    %v79 = vsel %vm78, %v77, %v74
    %80 = vrot.lane.b32.xlu0 %v79, 16
    %v81 = vpop.permute.xlu0 %80
    %vm82 = vcmask 261248
    %83 = vst.msk [vmem:[#allocation0] sm:$0xf] %vm82, %v81
    %s85 = sshllo.u32 0, 4
    %v87 = vld [vmem:[#allocation0] sm:%s85]
    %s88 = sshllo.u32 0, 4
    %89 = vst [vmem:[%s1] sm:%s88] %v87

// kernel: autoencoder_forward.1
$region0: #{autoencoder_forward.1}
  #allocation0 [shape = 'u32[]', space=smem, size = 0x4, offset = 0x4, fixed_abs, tag = 'smem constant byte address 0x4 - core index']
  #allocation1 [shape = 'u32[144,128]{1,0:T(1,128)}', space=vmem, size = 0x12000, scoped, tag = 'internal scratch']
  #allocation2 [shape = 'f32[32,128]{1,0:T(8,128)}', space=vmem, size = 0x4000, scoped, tag = 'scratch operand']
  #allocation3 [shape = 'f32[2,10,128]{2,1,0:T(8,128)}', space=vmem, size = 0x4000, scoped, tag = 'scratch operand']
  #allocation4 [shape = 'f32[16,16]{1,0:T(8,128)}', space=vmem, size = 0x2000, scoped, tag = 'scratch operand']
  %s0 = inlined_call_operand.hbm [shape: f32[2,18,48], index: 0, kind: input, shape index: {}]
  %s1 = inlined_call_operand.hbm [shape: f32[3,48,256], index: 1, kind: input, shape index: {}]
  %s2 = inlined_call_operand.hbm [shape: f32[1,256], index: 2, kind: input, shape index: {}]
  %s3 = inlined_call_operand.hbm [shape: f32[3,128,32], index: 3, kind: input, shape index: {}]
  %s4 = inlined_call_operand.hbm [shape: f32[1,32], index: 4, kind: input, shape index: {}]
  %s5 = inlined_call_operand.hbm [shape: f32[16,256], index: 5, kind: input, shape index: {}]
  %s6 = inlined_call_operand.hbm [shape: f32[1,256], index: 6, kind: input, shape index: {}]
  %s7 = inlined_call_operand.hbm [shape: f32[256,192], index: 7, kind: input, shape index: {}]
  %s8 = inlined_call_operand.hbm [shape: f32[1,192], index: 8, kind: input, shape index: {}]
  %s9 = inlined_call_operand.hbm [shape: f32[8,192], index: 9, kind: output, shape index: {}]
  %s10 = sld [smem:[#allocation0]]
  $region82: #{autoencoder_forward.1} parent=0
    _
  %s12 = ssub.s32 1, %s10
  %s13 = scalar_select 0, %s12, %s10
  $region1: #{autoencoder_forward.1} parent=0
    #allocation5 [shape = 'u8[24576]{0}', space=vmem, size = 0x6000, scoped, tag = 'input window, operand 0, single buffered']
    #allocation6 [shape = 's32[1]{0}', space=sflag, size = 0x4, scoped, tag = 'scoped memory for autoencoder_forward.1']
    #allocation7 [shape = 's32[1]{0}', space=sflag, size = 0x4, scoped, tag = 'scoped memory for autoencoder_forward.1']
    #allocation8 [shape = 'u8[147456]{0}', space=vmem, size = 0x24000, scoped, tag = 'input window, operand 1, single buffered']
    #allocation9 [shape = 's32[1]{0}', space=sflag, size = 0x4, scoped, tag = 'scoped memory for autoencoder_forward.1']
    #allocation10 [shape = 'u8[1024]{0}', space=vmem, size = 0x400, scoped, tag = 'input window, operand 2, single buffered']
    #allocation11 [shape = 'u8[196608]{0}', space=vmem, size = 0x30000, scoped, tag = 'input window, operand 3, single buffered']
    #allocation12 [shape = 's32[1]{0}', space=sflag, size = 0x4, scoped, tag = 'scoped memory for autoencoder_forward.1']
    #allocation13 [shape = 'u8[512]{0}', space=vmem, size = 0x400, scoped, tag = 'input window, operand 4, single buffered']
    #allocation14 [shape = 'u8[16384]{0}', space=vmem, size = 0x4000, scoped, tag = 'input window, operand 5, single buffered']
    #allocation15 [shape = 's32[1]{0}', space=sflag, size = 0x4, scoped, tag = 'scoped memory for autoencoder_forward.1']
    #allocation16 [shape = 'u8[1024]{0}', space=vmem, size = 0x400, scoped, tag = 'input window, operand 6, single buffered']
    #allocation17 [shape = 'u8[262144]{0}', space=vmem, size = 0x40000, scoped, tag = 'input window, operand 7, single buffered']
    #allocation18 [shape = 's32[1]{0}', space=sflag, size = 0x4, scoped, tag = 'scoped memory for autoencoder_forward.1']
    #allocation19 [shape = 'u8[1024]{0}', space=vmem, size = 0x400, scoped, tag = 'input window, operand 8, single buffered']
    #allocation20 [shape = 'u8[8192]{0}', space=vmem, size = 0x2000, scoped, tag = 'output window, operand 0, single buffered']
    %14 = vsyncpa [#allocation6], 0
    %15 = vsyncpa [#allocation9], 0
    %16 = vsyncpa [#allocation12], 0
    %17 = vsyncpa [#allocation15], 0
    %18 = vsyncpa [#allocation18], 0
    %19 = vsyncpa [#allocation7], 0
    // Predicated region
    $region2: #{autoencoder_forward.1} parent=1 // pred_check
      _
    $region3: #{autoencoder_forward.1} parent=1 // pred_check_branch
      %21 = sbr.rel (0) target = $region5
    $region4: #{autoencoder_forward.1} parent=1 // pred_region
      %s23 = ssub.s32 768, 768
      %24 = vsyncadd [#allocation6], %s23
      %s25 = sshll.u32 [#allocation5], 4
      %s26 = int_to_ptr.vmem [resolvable:$true] %s25
      %31 = dma.hbm_to_vmem [thread:$0]  %s0, 768, %s26, [#allocation6], 128, 128, 8
    $region5: #{autoencoder_forward.1} parent=1 // pred_fallthru
      _
    // Predicated region
    $region6: #{autoencoder_forward.1} parent=1 // pred_check
      _
    $region7: #{autoencoder_forward.1} parent=1 // pred_check_branch
      %33 = sbr.rel (0) target = $region9
    $region8: #{autoencoder_forward.1} parent=1 // pred_region
      %s35 = ssub.s32 4608, 4608
      %36 = vsyncadd [#allocation9], %s35
      %s37 = sshll.u32 [#allocation8], 4
      %s38 = int_to_ptr.vmem [resolvable:$true] %s37
      %43 = dma.hbm_to_vmem [thread:$0]  %s1, 4608, %s38, [#allocation9], 256, 256, 16
    $region9: #{autoencoder_forward.1} parent=1 // pred_fallthru
      _
    // Predicated region
    $region10: #{autoencoder_forward.1} parent=1 // pred_check
      _
    $region11: #{autoencoder_forward.1} parent=1 // pred_check_branch
      %45 = sbr.rel (0) target = $region13
    $region12: #{autoencoder_forward.1} parent=1 // pred_region
      %s47 = ssub.s32 32, 32
      %48 = vsyncadd [#allocation9], %s47
      %s50 = sshll.u32 [#allocation10], 4
      %s51 = int_to_ptr.vmem [resolvable:$true] %s50
      %53 = dma.hbm_to_vmem [thread:$0]  %s2, 32, %s51, [#allocation9]
    $region13: #{autoencoder_forward.1} parent=1 // pred_fallthru
      _
    // Predicated region
    $region14: #{autoencoder_forward.1} parent=1 // pred_check
      _
    $region15: #{autoencoder_forward.1} parent=1 // pred_check_branch
      %55 = sbr.rel (0) target = $region17
    $region16: #{autoencoder_forward.1} parent=1 // pred_region
      %s57 = ssub.s32 6144, 6144
      %58 = vsyncadd [#allocation12], %s57
      %s59 = sshll.u32 [#allocation11], 4
      %s60 = int_to_ptr.vmem [resolvable:$true] %s59
      %65 = dma.hbm_to_vmem [thread:$0]  %s3, 6144, %s60, [#allocation12], 128, 128, 8
    $region17: #{autoencoder_forward.1} parent=1 // pred_fallthru
      _
    // Predicated region
    $region18: #{autoencoder_forward.1} parent=1 // pred_check
      _
    $region19: #{autoencoder_forward.1} parent=1 // pred_check_branch
      %67 = sbr.rel (0) target = $region21
    $region20: #{autoencoder_forward.1} parent=1 // pred_region
      %s69 = ssub.s32 16, 16
      %70 = vsyncadd [#allocation12], %s69
      %s72 = sshll.u32 [#allocation13], 4
      %s73 = int_to_ptr.vmem [resolvable:$true] %s72
      %75 = dma.hbm_to_vmem [thread:$0]  %s4, 16, %s73, [#allocation12]
    $region21: #{autoencoder_forward.1} parent=1 // pred_fallthru
      _
    // Predicated region
    $region22: #{autoencoder_forward.1} parent=1 // pred_check
      _
    $region23: #{autoencoder_forward.1} parent=1 // pred_check_branch
      %77 = sbr.rel (0) target = $region25
    $region24: #{autoencoder_forward.1} parent=1 // pred_region
      %s79 = ssub.s32 512, 512
      %80 = vsyncadd [#allocation15], %s79
      %s81 = sshll.u32 [#allocation14], 4
      %s82 = int_to_ptr.vmem [resolvable:$true] %s81
      %87 = dma.hbm_to_vmem [thread:$0]  %s5, 512, %s82, [#allocation15], 256, 256, 16
    $region25: #{autoencoder_forward.1} parent=1 // pred_fallthru
      _
    // Predicated region
    $region26: #{autoencoder_forward.1} parent=1 // pred_check
      _
    $region27: #{autoencoder_forward.1} parent=1 // pred_check_branch
      %89 = sbr.rel (0) target = $region29
    $region28: #{autoencoder_forward.1} parent=1 // pred_region
      %s91 = ssub.s32 32, 32
      %92 = vsyncadd [#allocation15], %s91
      %s94 = sshll.u32 [#allocation16], 4
      %s95 = int_to_ptr.vmem [resolvable:$true] %s94
      %97 = dma.hbm_to_vmem [thread:$0]  %s6, 32, %s95, [#allocation15]
    $region29: #{autoencoder_forward.1} parent=1 // pred_fallthru
      _
    // Predicated region
    $region30: #{autoencoder_forward.1} parent=1 // pred_check
      _
    $region31: #{autoencoder_forward.1} parent=1 // pred_check_branch
      %99 = sbr.rel (0) target = $region33
    $region32: #{autoencoder_forward.1} parent=1 // pred_region
      %s101 = ssub.s32 8192, 8192
      %102 = vsyncadd [#allocation18], %s101
      %s103 = sshll.u32 [#allocation17], 4
      %s104 = int_to_ptr.vmem [resolvable:$true] %s103
      %109 = dma.hbm_to_vmem [thread:$0]  %s7, 8192, %s104, [#allocation18], 256, 256, 16
    $region33: #{autoencoder_forward.1} parent=1 // pred_fallthru
      _
    // Predicated region
    $region34: #{autoencoder_forward.1} parent=1 // pred_check
      _
    $region35: #{autoencoder_forward.1} parent=1 // pred_check_branch
      %111 = sbr.rel (0) target = $region37
    $region36: #{autoencoder_forward.1} parent=1 // pred_region
      %s113 = ssub.s32 32, 32
      %114 = vsyncadd [#allocation18], %s113
      %s116 = sshll.u32 [#allocation19], 4
      %s117 = int_to_ptr.vmem [resolvable:$true] %s116
      %119 = dma.hbm_to_vmem [thread:$0]  %s8, 32, %s117, [#allocation18]
    $region37: #{autoencoder_forward.1} parent=1 // pred_fallthru
      _
    // Predicated region
    $region38: #{autoencoder_forward.1} parent=1 // pred_check
      _
    $region39: #{autoencoder_forward.1} parent=1 // pred_check_branch
      %121 = sbr.rel (0) target = $region41
    $region40: #{autoencoder_forward.1} parent=1 // pred_region
      %122 = dma.done [#allocation6], 768
    $region41: #{autoencoder_forward.1} parent=1 // pred_fallthru
      _
    // Predicated region
    $region42: #{autoencoder_forward.1} parent=1 // pred_check
      _
    $region43: #{autoencoder_forward.1} parent=1 // pred_check_branch
      %124 = sbr.rel (0) target = $region45
    $region44: #{autoencoder_forward.1} parent=1 // pred_region
      %125 = dma.done [#allocation9], 4608
    $region45: #{autoencoder_forward.1} parent=1 // pred_fallthru
      _
    // Predicated region
    $region46: #{autoencoder_forward.1} parent=1 // pred_check
      _
    $region47: #{autoencoder_forward.1} parent=1 // pred_check_branch
      %127 = sbr.rel (0) target = $region49
    $region48: #{autoencoder_forward.1} parent=1 // pred_region
      %128 = dma.done [#allocation9], 32
    $region49: #{autoencoder_forward.1} parent=1 // pred_fallthru
      _
    // Predicated region
    $region50: #{autoencoder_forward.1} parent=1 // pred_check
      _
    $region51: #{autoencoder_forward.1} parent=1 // pred_check_branch
      %130 = sbr.rel (0) target = $region53
    $region52: #{autoencoder_forward.1} parent=1 // pred_region
      %131 = dma.done [#allocation12], 6144
    $region53: #{autoencoder_forward.1} parent=1 // pred_fallthru
      _
    // Predicated region
    $region54: #{autoencoder_forward.1} parent=1 // pred_check
      _
    $region55: #{autoencoder_forward.1} parent=1 // pred_check_branch
      %133 = sbr.rel (0) target = $region57
    $region56: #{autoencoder_forward.1} parent=1 // pred_region
      %134 = dma.done [#allocation12], 16
    $region57: #{autoencoder_forward.1} parent=1 // pred_fallthru
      _
    // Predicated region
    $region58: #{autoencoder_forward.1} parent=1 // pred_check
      _
    $region59: #{autoencoder_forward.1} parent=1 // pred_check_branch
      %136 = sbr.rel (0) target = $region61
    $region60: #{autoencoder_forward.1} parent=1 // pred_region
      %137 = dma.done [#allocation15], 512
    $region61: #{autoencoder_forward.1} parent=1 // pred_fallthru
      _
    // Predicated region
    $region62: #{autoencoder_forward.1} parent=1 // pred_check
      _
    $region63: #{autoencoder_forward.1} parent=1 // pred_check_branch
      %139 = sbr.rel (0) target = $region65
    $region64: #{autoencoder_forward.1} parent=1 // pred_region
      %140 = dma.done [#allocation15], 32
    $region65: #{autoencoder_forward.1} parent=1 // pred_fallthru
      _
    // Predicated region
    $region66: #{autoencoder_forward.1} parent=1 // pred_check
      _
    $region67: #{autoencoder_forward.1} parent=1 // pred_check_branch
      %142 = sbr.rel (0) target = $region69
    $region68: #{autoencoder_forward.1} parent=1 // pred_region
      %143 = dma.done [#allocation18], 8192
    $region69: #{autoencoder_forward.1} parent=1 // pred_fallthru
      _
    // Predicated region
    $region70: #{autoencoder_forward.1} parent=1 // pred_check
      _
    $region71: #{autoencoder_forward.1} parent=1 // pred_check_branch
      %145 = sbr.rel (0) target = $region73
    $region72: #{autoencoder_forward.1} parent=1 // pred_region
      %146 = dma.done [#allocation18], 32
    $region73: #{autoencoder_forward.1} parent=1 // pred_fallthru
      _
    %147 = vst [vmem:[#allocation3] sm:$0x1] 0.0
    %148 = vst [vmem:[#allocation3 + $0x10] sm:$0x1] 0.0
    %149 = vst [vmem:[#allocation3 + $0x9] sm:$0x1] 0.0
    %150 = vst [vmem:[#allocation3 + $0x19] sm:$0x1] 0.0
    %v151 = vld [vmem:[#allocation5] sm:$0xff]
    %v152 = vld [vmem:[#allocation5 + $0x8] sm:$0xff]
    %v153 = vld [vmem:[#allocation5 + $0x18] sm:$0xff]
    %v154 = vld [vmem:[#allocation5 + $0x20] sm:$0xff]
    %v155 = vld [vmem:[#allocation8] sm:$0xff]
    %v156 = vld [vmem:[#allocation8 + $0x8] sm:$0xff]
    %v157 = vld [vmem:[#allocation8 + $0x10] sm:$0xff]
    %v158 = vld [vmem:[#allocation8 + $0x18] sm:$0xff]
    %v159 = vld [vmem:[#allocation8 + $0x20] sm:$0xff]
    %v160 = vld [vmem:[#allocation8 + $0x28] sm:$0xff]
    %v161 = vld [vmem:[#allocation8 + $0x30] sm:$0xff]
    %v162 = vld [vmem:[#allocation8 + $0x38] sm:$0xff]
    %v163 = vld [vmem:[#allocation8 + $0x40] sm:$0xff]
    %v164 = vld [vmem:[#allocation8 + $0x48] sm:$0xff]
    %v165 = vld [vmem:[#allocation8 + $0x50] sm:$0xff]
    %v166 = vld [vmem:[#allocation8 + $0x58] sm:$0xff]
    %v167 = vld [vmem:[#allocation5 + $0x1] sm:$0xff]
    %v168 = vld [vmem:[#allocation5 + $0x9] sm:$0xff]
    %v169 = vld [vmem:[#allocation5 + $0x19] sm:$0xff]
    %v170 = vld [vmem:[#allocation5 + $0x21] sm:$0xff]
    %s171 = scalar_lea.vmem [#allocation8], 96
    %v172 = vld [vmem:[%s171] sm:$0xff]
    %v173 = vld [vmem:[%s171 + $0x8] sm:$0xff]
    %v174 = vld [vmem:[%s171 + $0x10] sm:$0xff]
    %v175 = vld [vmem:[%s171 + $0x18] sm:$0xff]
    %v176 = vld [vmem:[%s171 + $0x20] sm:$0xff]
    %v177 = vld [vmem:[%s171 + $0x28] sm:$0xff]
    %v178 = vld [vmem:[%s171 + $0x30] sm:$0xff]
    %v179 = vld [vmem:[%s171 + $0x38] sm:$0xff]
    %v180 = vld [vmem:[%s171 + $0x40] sm:$0xff]
    %v181 = vld [vmem:[%s171 + $0x48] sm:$0xff]
    %v182 = vld [vmem:[%s171 + $0x50] sm:$0xff]
    %v183 = vld [vmem:[%s171 + $0x58] sm:$0xff]
    %vm184 = vcmask 392192
    %v186 = vsel %vm184, %v167, 0
    %v189 = vsel %vm184, %v168, 0
    %v192 = vsel %vm184, %v169, 0
    %v195 = vsel %vm184, %v170, 0
    %197 = vmatprep.subr.mxu0 %v173
    %198 = vmatpush1.msra.mxu0 %v172
    %199 = vmatprep.subr.mxu0 %v175
    %200 = vmatpush1.msra.mxu0 %v174
    %201 = vmatprep.subr.mxu0 %v177
    %202 = vmatpush1.msra.mxu0 %v176
    %203 = vmatprep.subr.mxu0 %v179
    %204 = vmatpush1.msra.mxu0 %v178
    %205 = vmatprep.subr.mxu0 %v181
    %206 = vmatpush1.msra.mxu0 %v180
    %207 = vmatprep.subr.mxu0 %v183
    %208 = vmatpush1.msra.mxu0 %v182
    %209 = vmatprep.subr.mxu0 0.0
    %210 = vmatpush1.msra.mxu0 0.0
    %211 = vmatprep.subr.mxu0 0.0
    %212 = vmatpush1.msra.mxu0 0.0
    %213 = vmatprep.subr.mxu0 0.0
    %214 = vmatpush1.msra.mxu0 0.0
    %215 = vmatprep.subr.mxu0 0.0
    %216 = vmatpush1.msra.mxu0 0.0
    %217 = vmatprep.subr.mxu0 0.0
    %218 = vmatpush1.msra.mxu0 0.0
    %219 = vmatprep.subr.mxu0 0.0
    %220 = vmatpush1.msra.mxu0 0.0
    %221 = vmatprep.subr.mxu0 0.0
    %222 = vmatpush1.msra.mxu0 0.0
    %223 = vmatprep.subr.mxu0 0.0
    %224 = vmatpush1.msra.mxu0 0.0
    %225 = vmatprep.subr.mxu0 0.0
    %226 = vmatpush1.msra.mxu0 0.0
    %227 = vmatprep.subr.mxu0 0.0
    %228 = vmatpush1.msra.mxu0 0.0
    %229 = vmatprep.subr.mxu0 0.0
    %230 = vmatpush1.msra.mxu0 0.0
    %231 = vmatprep.subr.mxu0 0.0
    %232 = vmatpush1.msra.mxu0 0.0
    %233 = vmatprep.subr.mxu0 0.0
    %234 = vmatpush1.msra.mxu0 0.0
    %235 = vmatprep.subr.mxu0 0.0
    %236 = vmatpush1.msra.mxu0 0.0
    %237 = vmatprep.subr.mxu0 0.0
    %238 = vmatpush1.msra.mxu0 0.0
    %239 = vmatprep.subr.mxu0 0.0
    %240 = vmatpush1.msra.mxu0 0.0
    %241 = vmatprep.subr.mxu0 0.0
    %242 = vmatpush1.msra.mxu0 0.0
    %243 = vmatprep.subr.mxu0 0.0
    %244 = vmatpush1.msra.mxu0 0.0
    %245 = vmatprep.subr.mxu0 0.0
    %246 = vmatpush1.msra.mxu0 0.0
    %247 = vmatprep.subr.mxu0 0.0
    %248 = vmatpush1.msra.mxu0 0.0
    %249 = vmatprep.subr.mxu0 0.0
    %250 = vmatpush1.msra.mxu0 0.0
    %251 = vmatprep.subr.mxu0 0.0
    %252 = vmatpush1.msra.mxu0 0.0
    %253 = vmatprep.subr.mxu0 0.0
    %254 = vmatpush1.msra.mxu0 0.0
    %255 = vmatprep.subr.mxu0 0.0
    %256 = vmatpush1.msra.mxu0 0.0
    %257 = vmatprep.subr.mxu0 0.0
    %258 = vmatpush1.msra.mxu0 0.0
    %259 = vmatprep.subr.mxu0 0.0
    %260 = vmatpush1.msra.mxu0 0.0
    %261 = vmatprep.mubr.f32.mxu0 0.0
    %262 = vmatmul.mubr.f32.gmra.mrb[0].mxu0 %v186
    %v263 = vpop.f32.mrb[0].mxu0
    %v264 = vadd.f32 0.0, %v263
    %v265 = vpop.f32.mrb[0].mxu0
    %v266 = vadd.f32 0.0, %v265
    %267 = vmatprep.mubr.f32.mxu0 0.0
    %268 = vmatmul.mubr.f32.gmra.mrb[0].mxu0 %v189
    %v269 = vpop.f32.mrb[0].mxu0
    %v270 = vadd.f32 0.0, %v269
    %v271 = vpop.f32.mrb[0].mxu0
    %v272 = vadd.f32 0.0, %v271
    %273 = vmatprep.mubr.f32.mxu0 0.0
    %274 = vmatmul.mubr.f32.gmra.mrb[0].mxu0 %v192
    %v275 = vpop.f32.mrb[0].mxu0
    %v276 = vadd.f32 0.0, %v275
    %v277 = vpop.f32.mrb[0].mxu0
    %v278 = vadd.f32 0.0, %v277
    %279 = vmatprep.mubr.f32.mxu0 0.0
    %280 = vmatmul.mubr.f32.gmra.mrb[0].mxu0 %v195
    %v281 = vpop.f32.mrb[0].mxu0
    %v282 = vadd.f32 0.0, %v281
    %v283 = vpop.f32.mrb[0].mxu0
    %v284 = vadd.f32 0.0, %v283
    %285 = vdwg.mxu0
    %v287 = vsel %vm184, %v151, 0
    %v290 = vsel %vm184, %v152, 0
    %v293 = vsel %vm184, %v153, 0
    %v296 = vsel %vm184, %v154, 0
    %298 = vmatprep.subr.mxu0 %v156
    %299 = vmatpush1.msra.mxu0 %v155
    %300 = vmatprep.subr.mxu0 %v158
    %301 = vmatpush1.msra.mxu0 %v157
    %302 = vmatprep.subr.mxu0 %v160
    %303 = vmatpush1.msra.mxu0 %v159
    %304 = vmatprep.subr.mxu0 %v162
    %305 = vmatpush1.msra.mxu0 %v161
    %306 = vmatprep.subr.mxu0 %v164
    %307 = vmatpush1.msra.mxu0 %v163
    %308 = vmatprep.subr.mxu0 %v166
    %309 = vmatpush1.msra.mxu0 %v165
    %310 = vmatprep.subr.mxu0 0.0
    %311 = vmatpush1.msra.mxu0 0.0
    %312 = vmatprep.subr.mxu0 0.0
    %313 = vmatpush1.msra.mxu0 0.0
    %314 = vmatprep.subr.mxu0 0.0
    %315 = vmatpush1.msra.mxu0 0.0
    %316 = vmatprep.subr.mxu0 0.0
    %317 = vmatpush1.msra.mxu0 0.0
    %318 = vmatprep.subr.mxu0 0.0
    %319 = vmatpush1.msra.mxu0 0.0
    %320 = vmatprep.subr.mxu0 0.0
    %321 = vmatpush1.msra.mxu0 0.0
    %322 = vmatprep.subr.mxu0 0.0
    %323 = vmatpush1.msra.mxu0 0.0
    %324 = vmatprep.subr.mxu0 0.0
    %325 = vmatpush1.msra.mxu0 0.0
    %326 = vmatprep.subr.mxu0 0.0
    %327 = vmatpush1.msra.mxu0 0.0
    %328 = vmatprep.subr.mxu0 0.0
    %329 = vmatpush1.msra.mxu0 0.0
    %330 = vmatprep.subr.mxu0 0.0
    %331 = vmatpush1.msra.mxu0 0.0
    %332 = vmatprep.subr.mxu0 0.0
    %333 = vmatpush1.msra.mxu0 0.0
    %334 = vmatprep.subr.mxu0 0.0
    %335 = vmatpush1.msra.mxu0 0.0
    %336 = vmatprep.subr.mxu0 0.0
    %337 = vmatpush1.msra.mxu0 0.0
    %338 = vmatprep.subr.mxu0 0.0
    %339 = vmatpush1.msra.mxu0 0.0
    %340 = vmatprep.subr.mxu0 0.0
    %341 = vmatpush1.msra.mxu0 0.0
    %342 = vmatprep.subr.mxu0 0.0
    %343 = vmatpush1.msra.mxu0 0.0
    %344 = vmatprep.subr.mxu0 0.0
    %345 = vmatpush1.msra.mxu0 0.0
    %346 = vmatprep.subr.mxu0 0.0
    %347 = vmatpush1.msra.mxu0 0.0
    %348 = vmatprep.subr.mxu0 0.0
    %349 = vmatpush1.msra.mxu0 0.0
    %350 = vmatprep.subr.mxu0 0.0
    %351 = vmatpush1.msra.mxu0 0.0
    %352 = vmatprep.subr.mxu0 0.0
    %353 = vmatpush1.msra.mxu0 0.0
    %354 = vmatprep.subr.mxu0 0.0
    %355 = vmatpush1.msra.mxu0 0.0
    %356 = vmatprep.subr.mxu0 0.0
    %357 = vmatpush1.msra.mxu0 0.0
    %358 = vmatprep.subr.mxu0 0.0
    %359 = vmatpush1.msra.mxu0 0.0
    %360 = vmatprep.subr.mxu0 0.0
    %361 = vmatpush1.msra.mxu0 0.0
    %362 = vmatprep.mubr.f32.mxu0 0.0
    %363 = vmatmul.mubr.f32.gmra.mrb[0].mxu0 %v287
    %v364 = vpop.f32.mrb[0].mxu0
    %v365 = vadd.f32 %v264, %v364
    %v366 = vpop.f32.mrb[0].mxu0
    %v367 = vadd.f32 %v266, %v366
    %368 = vmatprep.mubr.f32.mxu0 0.0
    %369 = vmatmul.mubr.f32.gmra.mrb[0].mxu0 %v290
    %v370 = vpop.f32.mrb[0].mxu0
    %v371 = vadd.f32 %v270, %v370
    %v372 = vpop.f32.mrb[0].mxu0
    %v373 = vadd.f32 %v272, %v372
    %374 = vmatprep.mubr.f32.mxu0 0.0
    %375 = vmatmul.mubr.f32.gmra.mrb[0].mxu0 %v293
    %v376 = vpop.f32.mrb[0].mxu0
    %v377 = vadd.f32 %v276, %v376
    %v378 = vpop.f32.mrb[0].mxu0
    %v379 = vadd.f32 %v278, %v378
    %380 = vmatprep.mubr.f32.mxu0 0.0
    %381 = vmatmul.mubr.f32.gmra.mrb[0].mxu0 %v296
    %v382 = vpop.f32.mrb[0].mxu0
    %v383 = vadd.f32 %v282, %v382
    %v384 = vpop.f32.mrb[0].mxu0
    %v385 = vadd.f32 %v284, %v384
    %386 = vdwg.mxu0
    %v387 = vld [vmem:[#allocation5 + $0x2] sm:$0xff]
    %v388 = vld [vmem:[#allocation5 + $0xa] sm:$0xff]
    %v389 = vld [vmem:[#allocation5 + $0x1a] sm:$0xff]
    %v390 = vld [vmem:[#allocation5 + $0x22] sm:$0xff]
    %s391 = scalar_lea.vmem [#allocation8], 192
    %v392 = vld [vmem:[%s391] sm:$0xff]
    %v393 = vld [vmem:[%s391 + $0x8] sm:$0xff]
    %v394 = vld [vmem:[%s391 + $0x10] sm:$0xff]
    %v395 = vld [vmem:[%s391 + $0x18] sm:$0xff]
    %v396 = vld [vmem:[%s391 + $0x20] sm:$0xff]
    %v397 = vld [vmem:[%s391 + $0x28] sm:$0xff]
    %v398 = vld [vmem:[%s391 + $0x30] sm:$0xff]
    %v399 = vld [vmem:[%s391 + $0x38] sm:$0xff]
    %v400 = vld [vmem:[%s391 + $0x40] sm:$0xff]
    %v401 = vld [vmem:[%s391 + $0x48] sm:$0xff]
    %v402 = vld [vmem:[%s391 + $0x50] sm:$0xff]
    %v403 = vld [vmem:[%s391 + $0x58] sm:$0xff]
    %v405 = vsel %vm184, %v387, 0
    %v408 = vsel %vm184, %v388, 0
    %v411 = vsel %vm184, %v389, 0
    %v414 = vsel %vm184, %v390, 0
    %416 = vmatprep.subr.mxu0 %v393
    %417 = vmatpush1.msra.mxu0 %v392
    %418 = vmatprep.subr.mxu0 %v395
    %419 = vmatpush1.msra.mxu0 %v394
    %420 = vmatprep.subr.mxu0 %v397
    %421 = vmatpush1.msra.mxu0 %v396
    %422 = vmatprep.subr.mxu0 %v399
    %423 = vmatpush1.msra.mxu0 %v398
    %424 = vmatprep.subr.mxu0 %v401
    %425 = vmatpush1.msra.mxu0 %v400
    %426 = vmatprep.subr.mxu0 %v403
    %427 = vmatpush1.msra.mxu0 %v402
    %428 = vmatprep.subr.mxu0 0.0
    %429 = vmatpush1.msra.mxu0 0.0
    %430 = vmatprep.subr.mxu0 0.0
    %431 = vmatpush1.msra.mxu0 0.0
    %432 = vmatprep.subr.mxu0 0.0
    %433 = vmatpush1.msra.mxu0 0.0
    %434 = vmatprep.subr.mxu0 0.0
    %435 = vmatpush1.msra.mxu0 0.0
    %436 = vmatprep.subr.mxu0 0.0
    %437 = vmatpush1.msra.mxu0 0.0
    %438 = vmatprep.subr.mxu0 0.0
    %439 = vmatpush1.msra.mxu0 0.0
    %440 = vmatprep.subr.mxu0 0.0
    %441 = vmatpush1.msra.mxu0 0.0
    %442 = vmatprep.subr.mxu0 0.0
    %443 = vmatpush1.msra.mxu0 0.0
    %444 = vmatprep.subr.mxu0 0.0
    %445 = vmatpush1.msra.mxu0 0.0
    %446 = vmatprep.subr.mxu0 0.0
    %447 = vmatpush1.msra.mxu0 0.0
    %448 = vmatprep.subr.mxu0 0.0
    %449 = vmatpush1.msra.mxu0 0.0
    %450 = vmatprep.subr.mxu0 0.0
    %451 = vmatpush1.msra.mxu0 0.0
    %452 = vmatprep.subr.mxu0 0.0
    %453 = vmatpush1.msra.mxu0 0.0
    %454 = vmatprep.subr.mxu0 0.0
    %455 = vmatpush1.msra.mxu0 0.0
    %456 = vmatprep.subr.mxu0 0.0
    %457 = vmatpush1.msra.mxu0 0.0
    %458 = vmatprep.subr.mxu0 0.0
    %459 = vmatpush1.msra.mxu0 0.0
    %460 = vmatprep.subr.mxu0 0.0
    %461 = vmatpush1.msra.mxu0 0.0
    %462 = vmatprep.subr.mxu0 0.0
    %463 = vmatpush1.msra.mxu0 0.0
    %464 = vmatprep.subr.mxu0 0.0
    %465 = vmatpush1.msra.mxu0 0.0
    %466 = vmatprep.subr.mxu0 0.0
    %467 = vmatpush1.msra.mxu0 0.0
    %468 = vmatprep.subr.mxu0 0.0
    %469 = vmatpush1.msra.mxu0 0.0
    %470 = vmatprep.subr.mxu0 0.0
    %471 = vmatpush1.msra.mxu0 0.0
    %472 = vmatprep.subr.mxu0 0.0
    %473 = vmatpush1.msra.mxu0 0.0
    %474 = vmatprep.subr.mxu0 0.0
    %475 = vmatpush1.msra.mxu0 0.0
    %476 = vmatprep.subr.mxu0 0.0
    %477 = vmatpush1.msra.mxu0 0.0
    %478 = vmatprep.subr.mxu0 0.0
    %479 = vmatpush1.msra.mxu0 0.0
    %480 = vmatprep.mubr.f32.mxu0 0.0
    %481 = vmatmul.mubr.f32.gmra.mrb[0].mxu0 %v405
    %v482 = vpop.f32.mrb[0].mxu0
    %v483 = vadd.f32 0.0, %v482
    %v484 = vpop.f32.mrb[0].mxu0
    %v485 = vadd.f32 0.0, %v484
    %486 = vmatprep.mubr.f32.mxu0 0.0
    %487 = vmatmul.mubr.f32.gmra.mrb[0].mxu0 %v408
    %v488 = vpop.f32.mrb[0].mxu0
    %v489 = vadd.f32 0.0, %v488
    %v490 = vpop.f32.mrb[0].mxu0
    %v491 = vadd.f32 0.0, %v490
    %492 = vmatprep.mubr.f32.mxu0 0.0
    %493 = vmatmul.mubr.f32.gmra.mrb[0].mxu0 %v411
    %v494 = vpop.f32.mrb[0].mxu0
    %v495 = vadd.f32 0.0, %v494
    %v496 = vpop.f32.mrb[0].mxu0
    %v497 = vadd.f32 0.0, %v496
    %498 = vmatprep.mubr.f32.mxu0 0.0
    %499 = vmatmul.mubr.f32.gmra.mrb[0].mxu0 %v414
    %v500 = vpop.f32.mrb[0].mxu0
    %v501 = vadd.f32 0.0, %v500
    %v502 = vpop.f32.mrb[0].mxu0
    %v503 = vadd.f32 0.0, %v502
    %504 = vdwg.mxu0
    %v505 = vadd.f32 %v365, %v483
    %v506 = vadd.f32 %v367, %v485
    %v507 = vadd.f32 %v371, %v489
    %v508 = vadd.f32 %v373, %v491
    %v509 = vadd.f32 %v377, %v495
    %v510 = vadd.f32 %v379, %v497
    %v511 = vadd.f32 %v383, %v501
    %v512 = vadd.f32 %v385, %v503
    %v513 = vld [vmem:[#allocation10] sm:$0x3]
    %v515 = vlaneseq
    %v516 = vshrl.u32 %v515, 7
    %v517 = vsub.s32 0, %v516
    %v518 = vrot.slane %v513, %v517
    %v519 = vlaneseq
    %v520 = vshrl.u32 %v519, 7
    %v521 = vsub.s32 1, %v520
    %v522 = vrot.slane %v513, %v521
    %v525 = vadd.f32 %v505, %v518
    %v526 = vadd.f32 %v506, %v522
    %v527 = vadd.f32 %v507, %v518
    %v528 = vadd.f32 %v508, %v522
    %v529 = vadd.f32 %v509, %v518
    %v530 = vadd.f32 %v510, %v522
    %v531 = vadd.f32 %v511, %v518
    %v532 = vadd.f32 %v512, %v522
    %v533 = vmax.f32 %v525, 0.0
    %v534 = vmax.f32 %v526, 0.0
    %v535 = vmax.f32 %v527, 0.0
    %v536 = vmax.f32 %v528, 0.0
    %v537 = vmax.f32 %v529, 0.0
    %v538 = vmax.f32 %v530, 0.0
    %v539 = vmax.f32 %v531, 0.0
    %v540 = vmax.f32 %v532, 0.0
    %v541 = vmax.f32 %v533, %v534
    %v542 = vmax.f32 %v535, %v536
    %v543 = vmax.f32 %v537, %v538
    %v544 = vmax.f32 %v539, %v540
    %545 = vst [vmem:[#allocation2] sm:$0xff] %v541
    %546 = vst [vmem:[#allocation2 + $0x8] sm:$0xff] %v542
    %547 = vst [vmem:[#allocation2 + $0x10] sm:$0xff] %v543
    %548 = vst [vmem:[#allocation2 + $0x18] sm:$0xff] %v544
    %v549 = vld [vmem:[#allocation2] ss:$2 sm:$0xff]
    %s550 = scalar_lea.vmem [#allocation2], 16
    %v551 = vld [vmem:[%s550] ss:$2 sm:$0xff]
    %s552 = scalar_lea.vmem [#allocation2], 1
    %v553 = vld [vmem:[%s552] ss:$2 sm:$0xff]
    %s554 = scalar_lea.vmem [#allocation2], 17
    %v555 = vld [vmem:[%s554] ss:$2 sm:$0xff]
    %v556 = vmax.f32 %v549, %v553
    %v557 = vmax.f32 %v551, %v555
    %558 = vst [vmem:[#allocation3 + $0x1] sm:$0xff] %v556
    %559 = vst [vmem:[#allocation3 + $0x11] sm:$0xff] %v557
    %v560 = vld [vmem:[#allocation3] sm:$0xff]
    %v561 = vld [vmem:[#allocation3 + $0x10] sm:$0xff]
    %v562 = vld [vmem:[#allocation11] sm:$0xff]
    %v563 = vld [vmem:[#allocation11 + $0x8] sm:$0xff]
    %v564 = vld [vmem:[#allocation11 + $0x10] sm:$0xff]
    %v565 = vld [vmem:[#allocation11 + $0x18] sm:$0xff]
    %v566 = vld [vmem:[#allocation11 + $0x20] sm:$0xff]
    %v567 = vld [vmem:[#allocation11 + $0x28] sm:$0xff]
    %v568 = vld [vmem:[#allocation11 + $0x30] sm:$0xff]
    %v569 = vld [vmem:[#allocation11 + $0x38] sm:$0xff]
    %v570 = vld [vmem:[#allocation11 + $0x40] sm:$0xff]
    %v571 = vld [vmem:[#allocation11 + $0x48] sm:$0xff]
    %v572 = vld [vmem:[#allocation11 + $0x50] sm:$0xff]
    %v573 = vld [vmem:[#allocation11 + $0x58] sm:$0xff]
    %v574 = vld [vmem:[#allocation11 + $0x60] sm:$0xff]
    %v575 = vld [vmem:[#allocation11 + $0x68] sm:$0xff]
    %v576 = vld [vmem:[#allocation11 + $0x70] sm:$0xff]
    %v577 = vld [vmem:[#allocation11 + $0x78] sm:$0xff]
    %s578 = scalar_lea.vmem [#allocation11], 128
    %v579 = vld [vmem:[%s578] sm:$0xff]
    %v580 = vld [vmem:[%s578 + $0x8] sm:$0xff]
    %v581 = vld [vmem:[%s578 + $0x10] sm:$0xff]
    %v582 = vld [vmem:[%s578 + $0x18] sm:$0xff]
    %v583 = vld [vmem:[%s578 + $0x20] sm:$0xff]
    %v584 = vld [vmem:[%s578 + $0x28] sm:$0xff]
    %v585 = vld [vmem:[%s578 + $0x30] sm:$0xff]
    %v586 = vld [vmem:[%s578 + $0x38] sm:$0xff]
    %v587 = vld [vmem:[%s578 + $0x40] sm:$0xff]
    %v588 = vld [vmem:[%s578 + $0x48] sm:$0xff]
    %v589 = vld [vmem:[%s578 + $0x50] sm:$0xff]
    %v590 = vld [vmem:[%s578 + $0x58] sm:$0xff]
    %v591 = vld [vmem:[%s578 + $0x60] sm:$0xff]
    %v592 = vld [vmem:[%s578 + $0x68] sm:$0xff]
    %v593 = vld [vmem:[%s578 + $0x70] sm:$0xff]
    %v594 = vld [vmem:[%s578 + $0x78] sm:$0xff]
    %595 = vmatprep.subr.mxu0 0.0
    %596 = vmatpush1.msra.mxu0 %v579
    %597 = vmatprep.subr.mxu0 0.0
    %598 = vmatpush1.msra.mxu0 %v580
    %599 = vmatprep.subr.mxu0 0.0
    %600 = vmatpush1.msra.mxu0 %v581
    %601 = vmatprep.subr.mxu0 0.0
    %602 = vmatpush1.msra.mxu0 %v582
    %603 = vmatprep.subr.mxu0 0.0
    %604 = vmatpush1.msra.mxu0 %v583
    %605 = vmatprep.subr.mxu0 0.0
    %606 = vmatpush1.msra.mxu0 %v584
    %607 = vmatprep.subr.mxu0 0.0
    %608 = vmatpush1.msra.mxu0 %v585
    %609 = vmatprep.subr.mxu0 0.0
    %610 = vmatpush1.msra.mxu0 %v586
    %611 = vmatprep.subr.mxu0 0.0
    %612 = vmatpush1.msra.mxu0 %v587
    %613 = vmatprep.subr.mxu0 0.0
    %614 = vmatpush1.msra.mxu0 %v588
    %615 = vmatprep.subr.mxu0 0.0
    %616 = vmatpush1.msra.mxu0 %v589
    %617 = vmatprep.subr.mxu0 0.0
    %618 = vmatpush1.msra.mxu0 %v590
    %619 = vmatprep.subr.mxu0 0.0
    %620 = vmatpush1.msra.mxu0 %v591
    %621 = vmatprep.subr.mxu0 0.0
    %622 = vmatpush1.msra.mxu0 %v592
    %623 = vmatprep.subr.mxu0 0.0
    %624 = vmatpush1.msra.mxu0 %v593
    %625 = vmatprep.subr.mxu0 0.0
    %626 = vmatpush1.msra.mxu0 %v594
    %627 = vmatprep.subr.mxu0 0.0
    %628 = vmatpush1.msra.mxu0 0.0
    %629 = vmatprep.subr.mxu0 0.0
    %630 = vmatpush1.msra.mxu0 0.0
    %631 = vmatprep.subr.mxu0 0.0
    %632 = vmatpush1.msra.mxu0 0.0
    %633 = vmatprep.subr.mxu0 0.0
    %634 = vmatpush1.msra.mxu0 0.0
    %635 = vmatprep.subr.mxu0 0.0
    %636 = vmatpush1.msra.mxu0 0.0
    %637 = vmatprep.subr.mxu0 0.0
    %638 = vmatpush1.msra.mxu0 0.0
    %639 = vmatprep.subr.mxu0 0.0
    %640 = vmatpush1.msra.mxu0 0.0
    %641 = vmatprep.subr.mxu0 0.0
    %642 = vmatpush1.msra.mxu0 0.0
    %643 = vmatprep.subr.mxu0 0.0
    %644 = vmatpush1.msra.mxu0 0.0
    %645 = vmatprep.subr.mxu0 0.0
    %646 = vmatpush1.msra.mxu0 0.0
    %647 = vmatprep.subr.mxu0 0.0
    %648 = vmatpush1.msra.mxu0 0.0
    %649 = vmatprep.subr.mxu0 0.0
    %650 = vmatpush1.msra.mxu0 0.0
    %651 = vmatprep.subr.mxu0 0.0
    %652 = vmatpush1.msra.mxu0 0.0
    %653 = vmatprep.subr.mxu0 0.0
    %654 = vmatpush1.msra.mxu0 0.0
    %655 = vmatprep.subr.mxu0 0.0
    %656 = vmatpush1.msra.mxu0 0.0
    %657 = vmatprep.subr.mxu0 0.0
    %658 = vmatpush1.msra.mxu0 0.0
    %659 = vmatprep.mubr.f32.mxu0 0.0
    %660 = vmatmul.mubr.f32.gmra.mrb[0].mxu0 %v556
    %v661 = vpop.f32.mrb[0].mxu0
    %v662 = vadd.f32 0.0, %v661
    %v663 = vpop.f32.mrb[0].mxu0
    %664 = vmatprep.mubr.f32.mxu0 0.0
    %665 = vmatmul.mubr.f32.gmra.mrb[0].mxu0 %v557
    %v666 = vpop.f32.mrb[0].mxu0
    %v667 = vadd.f32 0.0, %v666
    %v668 = vpop.f32.mrb[0].mxu0
    %669 = vdwg.mxu0
    %670 = vmatprep.subr.mxu0 0.0
    %671 = vmatpush1.msra.mxu0 %v562
    %672 = vmatprep.subr.mxu0 0.0
    %673 = vmatpush1.msra.mxu0 %v563
    %674 = vmatprep.subr.mxu0 0.0
    %675 = vmatpush1.msra.mxu0 %v564
    %676 = vmatprep.subr.mxu0 0.0
    %677 = vmatpush1.msra.mxu0 %v565
    %678 = vmatprep.subr.mxu0 0.0
    %679 = vmatpush1.msra.mxu0 %v566
    %680 = vmatprep.subr.mxu0 0.0
    %681 = vmatpush1.msra.mxu0 %v567
    %682 = vmatprep.subr.mxu0 0.0
    %683 = vmatpush1.msra.mxu0 %v568
    %684 = vmatprep.subr.mxu0 0.0
    %685 = vmatpush1.msra.mxu0 %v569
    %686 = vmatprep.subr.mxu0 0.0
    %687 = vmatpush1.msra.mxu0 %v570
    %688 = vmatprep.subr.mxu0 0.0
    %689 = vmatpush1.msra.mxu0 %v571
    %690 = vmatprep.subr.mxu0 0.0
    %691 = vmatpush1.msra.mxu0 %v572
    %692 = vmatprep.subr.mxu0 0.0
    %693 = vmatpush1.msra.mxu0 %v573
    %694 = vmatprep.subr.mxu0 0.0
    %695 = vmatpush1.msra.mxu0 %v574
    %696 = vmatprep.subr.mxu0 0.0
    %697 = vmatpush1.msra.mxu0 %v575
    %698 = vmatprep.subr.mxu0 0.0
    %699 = vmatpush1.msra.mxu0 %v576
    %700 = vmatprep.subr.mxu0 0.0
    %701 = vmatpush1.msra.mxu0 %v577
    %702 = vmatprep.subr.mxu0 0.0
    %703 = vmatpush1.msra.mxu0 0.0
    %704 = vmatprep.subr.mxu0 0.0
    %705 = vmatpush1.msra.mxu0 0.0
    %706 = vmatprep.subr.mxu0 0.0
    %707 = vmatpush1.msra.mxu0 0.0
    %708 = vmatprep.subr.mxu0 0.0
    %709 = vmatpush1.msra.mxu0 0.0
    %710 = vmatprep.subr.mxu0 0.0
    %711 = vmatpush1.msra.mxu0 0.0
    %712 = vmatprep.subr.mxu0 0.0
    %713 = vmatpush1.msra.mxu0 0.0
    %714 = vmatprep.subr.mxu0 0.0
    %715 = vmatpush1.msra.mxu0 0.0
    %716 = vmatprep.subr.mxu0 0.0
    %717 = vmatpush1.msra.mxu0 0.0
    %718 = vmatprep.subr.mxu0 0.0
    %719 = vmatpush1.msra.mxu0 0.0
    %720 = vmatprep.subr.mxu0 0.0
    %721 = vmatpush1.msra.mxu0 0.0
    %722 = vmatprep.subr.mxu0 0.0
    %723 = vmatpush1.msra.mxu0 0.0
    %724 = vmatprep.subr.mxu0 0.0
    %725 = vmatpush1.msra.mxu0 0.0
    %726 = vmatprep.subr.mxu0 0.0
    %727 = vmatpush1.msra.mxu0 0.0
    %728 = vmatprep.subr.mxu0 0.0
    %729 = vmatpush1.msra.mxu0 0.0
    %730 = vmatprep.subr.mxu0 0.0
    %731 = vmatpush1.msra.mxu0 0.0
    %732 = vmatprep.subr.mxu0 0.0
    %733 = vmatpush1.msra.mxu0 0.0
    %734 = vmatprep.mubr.f32.mxu0 0.0
    %735 = vmatmul.mubr.f32.gmra.mrb[0].mxu0 %v560
    %v736 = vpop.f32.mrb[0].mxu0
    %v737 = vadd.f32 %v662, %v736
    %v738 = vpop.f32.mrb[0].mxu0
    %739 = vmatprep.mubr.f32.mxu0 0.0
    %740 = vmatmul.mubr.f32.gmra.mrb[0].mxu0 %v561
    %v741 = vpop.f32.mrb[0].mxu0
    %v742 = vadd.f32 %v667, %v741
    %v743 = vpop.f32.mrb[0].mxu0
    %744 = vdwg.mxu0
    %v745 = vld [vmem:[#allocation3 + $0x2] sm:$0xff]
    %v746 = vld [vmem:[#allocation3 + $0x12] sm:$0xff]
    %s747 = scalar_lea.vmem [#allocation11], 256
    %v748 = vld [vmem:[%s747] sm:$0xff]
    %v749 = vld [vmem:[%s747 + $0x8] sm:$0xff]
    %v750 = vld [vmem:[%s747 + $0x10] sm:$0xff]
    %v751 = vld [vmem:[%s747 + $0x18] sm:$0xff]
    %v752 = vld [vmem:[%s747 + $0x20] sm:$0xff]
    %v753 = vld [vmem:[%s747 + $0x28] sm:$0xff]
    %v754 = vld [vmem:[%s747 + $0x30] sm:$0xff]
    %v755 = vld [vmem:[%s747 + $0x38] sm:$0xff]
    %v756 = vld [vmem:[%s747 + $0x40] sm:$0xff]
    %v757 = vld [vmem:[%s747 + $0x48] sm:$0xff]
    %v758 = vld [vmem:[%s747 + $0x50] sm:$0xff]
    %v759 = vld [vmem:[%s747 + $0x58] sm:$0xff]
    %v760 = vld [vmem:[%s747 + $0x60] sm:$0xff]
    %v761 = vld [vmem:[%s747 + $0x68] sm:$0xff]
    %v762 = vld [vmem:[%s747 + $0x70] sm:$0xff]
    %v763 = vld [vmem:[%s747 + $0x78] sm:$0xff]
    %764 = vmatprep.subr.mxu0 0.0
    %765 = vmatpush1.msra.mxu0 %v748
    %766 = vmatprep.subr.mxu0 0.0
    %767 = vmatpush1.msra.mxu0 %v749
    %768 = vmatprep.subr.mxu0 0.0
    %769 = vmatpush1.msra.mxu0 %v750
    %770 = vmatprep.subr.mxu0 0.0
    %771 = vmatpush1.msra.mxu0 %v751
    %772 = vmatprep.subr.mxu0 0.0
    %773 = vmatpush1.msra.mxu0 %v752
    %774 = vmatprep.subr.mxu0 0.0
    %775 = vmatpush1.msra.mxu0 %v753
    %776 = vmatprep.subr.mxu0 0.0
    %777 = vmatpush1.msra.mxu0 %v754
    %778 = vmatprep.subr.mxu0 0.0
    %779 = vmatpush1.msra.mxu0 %v755
    %780 = vmatprep.subr.mxu0 0.0
    %781 = vmatpush1.msra.mxu0 %v756
    %782 = vmatprep.subr.mxu0 0.0
    %783 = vmatpush1.msra.mxu0 %v757
    %784 = vmatprep.subr.mxu0 0.0
    %785 = vmatpush1.msra.mxu0 %v758
    %786 = vmatprep.subr.mxu0 0.0
    %787 = vmatpush1.msra.mxu0 %v759
    %788 = vmatprep.subr.mxu0 0.0
    %789 = vmatpush1.msra.mxu0 %v760
    %790 = vmatprep.subr.mxu0 0.0
    %791 = vmatpush1.msra.mxu0 %v761
    %792 = vmatprep.subr.mxu0 0.0
    %793 = vmatpush1.msra.mxu0 %v762
    %794 = vmatprep.subr.mxu0 0.0
    %795 = vmatpush1.msra.mxu0 %v763
    %796 = vmatprep.subr.mxu0 0.0
    %797 = vmatpush1.msra.mxu0 0.0
    %798 = vmatprep.subr.mxu0 0.0
    %799 = vmatpush1.msra.mxu0 0.0
    %800 = vmatprep.subr.mxu0 0.0
    %801 = vmatpush1.msra.mxu0 0.0
    %802 = vmatprep.subr.mxu0 0.0
    %803 = vmatpush1.msra.mxu0 0.0
    %804 = vmatprep.subr.mxu0 0.0
    %805 = vmatpush1.msra.mxu0 0.0
    %806 = vmatprep.subr.mxu0 0.0
    %807 = vmatpush1.msra.mxu0 0.0
    %808 = vmatprep.subr.mxu0 0.0
    %809 = vmatpush1.msra.mxu0 0.0
    %810 = vmatprep.subr.mxu0 0.0
    %811 = vmatpush1.msra.mxu0 0.0
    %812 = vmatprep.subr.mxu0 0.0
    %813 = vmatpush1.msra.mxu0 0.0
    %814 = vmatprep.subr.mxu0 0.0
    %815 = vmatpush1.msra.mxu0 0.0
    %816 = vmatprep.subr.mxu0 0.0
    %817 = vmatpush1.msra.mxu0 0.0
    %818 = vmatprep.subr.mxu0 0.0
    %819 = vmatpush1.msra.mxu0 0.0
    %820 = vmatprep.subr.mxu0 0.0
    %821 = vmatpush1.msra.mxu0 0.0
    %822 = vmatprep.subr.mxu0 0.0
    %823 = vmatpush1.msra.mxu0 0.0
    %824 = vmatprep.subr.mxu0 0.0
    %825 = vmatpush1.msra.mxu0 0.0
    %826 = vmatprep.subr.mxu0 0.0
    %827 = vmatpush1.msra.mxu0 0.0
    %828 = vmatprep.mubr.f32.mxu0 0.0
    %829 = vmatmul.mubr.f32.gmra.mrb[0].mxu0 %v745
    %v830 = vpop.f32.mrb[0].mxu0
    %v831 = vadd.f32 0.0, %v830
    %v832 = vpop.f32.mrb[0].mxu0
    %833 = vmatprep.mubr.f32.mxu0 0.0
    %834 = vmatmul.mubr.f32.gmra.mrb[0].mxu0 %v746
    %v835 = vpop.f32.mrb[0].mxu0
    %v836 = vadd.f32 0.0, %v835
    %v837 = vpop.f32.mrb[0].mxu0
    %838 = vdwg.mxu0
    %v839 = vadd.f32 %v737, %v831
    %v840 = vadd.f32 %v742, %v836
    %v841 = vld [vmem:[#allocation13] sm:$0x1]
    %v843 = vlaneseq
    %v844 = vshrl.u32 %v843, 7
    %v845 = vsub.s32 0, %v844
    %v846 = vrot.slane %v841, %v845
    %v848 = vadd.f32 %v839, %v846
    %v849 = vadd.f32 %v840, %v846
    %v850 = vmax.f32 %v848, 0.0
    %v851 = vmax.f32 %v849, 0.0
    %854 = vrot.lane.b32.xlu0 %v850, 112
    %v855 = vpop.permute.xlu0 %854
    %856 = vrot.lane.b32.xlu0 %v851, 112
    %v857 = vpop.permute.xlu0 %856
    %v860 = vmax.f32 %v850, %v855
    %v861 = vmax.f32 %v851, %v857
    %vm862 = vcmask 130048
    %863 = vst.msk [vmem:[#allocation4] sm:$0xff] %vm862, %v860
    %864 = vst.msk [vmem:[#allocation4 + $0x8] sm:$0xff] %vm862, %v861
    %v865 = vld [vmem:[#allocation4] ss:$2 sm:$0xff]
    %s866 = scalar_lea.vmem [#allocation4], 1
    %v867 = vld [vmem:[%s866] ss:$2 sm:$0xff]
    %v868 = vmax.f32 %v865, %v867
    %v869 = vld [vmem:[#allocation14] sm:$0xff]
    %v870 = vld [vmem:[#allocation14 + $0x8] sm:$0xff]
    %v871 = vld [vmem:[#allocation14 + $0x10] sm:$0xff]
    %v872 = vld [vmem:[#allocation14 + $0x18] sm:$0xff]
    %v873 = vld [vmem:[#allocation16] sm:$0x3]
    %v875 = vlaneseq
    %v876 = vshrl.u32 %v875, 7
    %v877 = vsub.s32 0, %v876
    %v878 = vrot.slane %v873, %v877
    %v879 = vlaneseq
    %v880 = vshrl.u32 %v879, 7
    %v881 = vsub.s32 1, %v880
    %v882 = vrot.slane %v873, %v881
    %v886 = vsel %vm862, %v868, 0
    %888 = vmatprep.subr.mxu0 %v870
    %889 = vmatpush1.msra.mxu0 %v869
    %890 = vmatprep.subr.mxu0 %v872
    %891 = vmatpush1.msra.mxu0 %v871
    %892 = vmatprep.subr.mxu0 0.0
    %893 = vmatpush1.msra.mxu0 0.0
    %894 = vmatprep.subr.mxu0 0.0
    %895 = vmatpush1.msra.mxu0 0.0
    %896 = vmatprep.subr.mxu0 0.0
    %897 = vmatpush1.msra.mxu0 0.0
    %898 = vmatprep.subr.mxu0 0.0
    %899 = vmatpush1.msra.mxu0 0.0
    %900 = vmatprep.subr.mxu0 0.0
    %901 = vmatpush1.msra.mxu0 0.0
    %902 = vmatprep.subr.mxu0 0.0
    %903 = vmatpush1.msra.mxu0 0.0
    %904 = vmatprep.subr.mxu0 0.0
    %905 = vmatpush1.msra.mxu0 0.0
    %906 = vmatprep.subr.mxu0 0.0
    %907 = vmatpush1.msra.mxu0 0.0
    %908 = vmatprep.subr.mxu0 0.0
    %909 = vmatpush1.msra.mxu0 0.0
    %910 = vmatprep.subr.mxu0 0.0
    %911 = vmatpush1.msra.mxu0 0.0
    %912 = vmatprep.subr.mxu0 0.0
    %913 = vmatpush1.msra.mxu0 0.0
    %914 = vmatprep.subr.mxu0 0.0
    %915 = vmatpush1.msra.mxu0 0.0
    %916 = vmatprep.subr.mxu0 0.0
    %917 = vmatpush1.msra.mxu0 0.0
    %918 = vmatprep.subr.mxu0 0.0
    %919 = vmatpush1.msra.mxu0 0.0
    %920 = vmatprep.subr.mxu0 0.0
    %921 = vmatpush1.msra.mxu0 0.0
    %922 = vmatprep.subr.mxu0 0.0
    %923 = vmatpush1.msra.mxu0 0.0
    %924 = vmatprep.subr.mxu0 0.0
    %925 = vmatpush1.msra.mxu0 0.0
    %926 = vmatprep.subr.mxu0 0.0
    %927 = vmatpush1.msra.mxu0 0.0
    %928 = vmatprep.subr.mxu0 0.0
    %929 = vmatpush1.msra.mxu0 0.0
    %930 = vmatprep.subr.mxu0 0.0
    %931 = vmatpush1.msra.mxu0 0.0
    %932 = vmatprep.subr.mxu0 0.0
    %933 = vmatpush1.msra.mxu0 0.0
    %934 = vmatprep.subr.mxu0 0.0
    %935 = vmatpush1.msra.mxu0 0.0
    %936 = vmatprep.subr.mxu0 0.0
    %937 = vmatpush1.msra.mxu0 0.0
    %938 = vmatprep.subr.mxu0 0.0
    %939 = vmatpush1.msra.mxu0 0.0
    %940 = vmatprep.subr.mxu0 0.0
    %941 = vmatpush1.msra.mxu0 0.0
    %942 = vmatprep.subr.mxu0 0.0
    %943 = vmatpush1.msra.mxu0 0.0
    %944 = vmatprep.subr.mxu0 0.0
    %945 = vmatpush1.msra.mxu0 0.0
    %946 = vmatprep.subr.mxu0 0.0
    %947 = vmatpush1.msra.mxu0 0.0
    %948 = vmatprep.subr.mxu0 0.0
    %949 = vmatpush1.msra.mxu0 0.0
    %950 = vmatprep.subr.mxu0 0.0
    %951 = vmatpush1.msra.mxu0 0.0
    %952 = vmatprep.mubr.f32.mxu0 0.0
    %953 = vmatmul.mubr.f32.gmra.mrb[0].mxu0 %v886
    %v954 = vpop.f32.mrb[0].mxu0
    %v955 = vadd.f32 %v878, %v954
    %v956 = vpop.f32.mrb[0].mxu0
    %v957 = vadd.f32 %v882, %v956
    %958 = vdwg.mxu0
    %v959 = vmax.f32 %v955, 0.0
    %v960 = vmax.f32 %v957, 0.0
    %v961 = vld [vmem:[#allocation17] sm:$0xff]
    %v962 = vld [vmem:[#allocation17 + $0x8] sm:$0xff]
    %v963 = vld [vmem:[#allocation17 + $0x10] sm:$0xff]
    %v964 = vld [vmem:[#allocation17 + $0x18] sm:$0xff]
    %v965 = vld [vmem:[#allocation17 + $0x20] sm:$0xff]
    %v966 = vld [vmem:[#allocation17 + $0x28] sm:$0xff]
    %v967 = vld [vmem:[#allocation17 + $0x30] sm:$0xff]
    %v968 = vld [vmem:[#allocation17 + $0x38] sm:$0xff]
    %v969 = vld [vmem:[#allocation17 + $0x40] sm:$0xff]
    %v970 = vld [vmem:[#allocation17 + $0x48] sm:$0xff]
    %v971 = vld [vmem:[#allocation17 + $0x50] sm:$0xff]
    %v972 = vld [vmem:[#allocation17 + $0x58] sm:$0xff]
    %v973 = vld [vmem:[#allocation17 + $0x60] sm:$0xff]
    %v974 = vld [vmem:[#allocation17 + $0x68] sm:$0xff]
    %v975 = vld [vmem:[#allocation17 + $0x70] sm:$0xff]
    %v976 = vld [vmem:[#allocation17 + $0x78] sm:$0xff]
    %v977 = vld [vmem:[#allocation17 + $0x80] sm:$0xff]
    %v978 = vld [vmem:[#allocation17 + $0x88] sm:$0xff]
    %v979 = vld [vmem:[#allocation17 + $0x90] sm:$0xff]
    %v980 = vld [vmem:[#allocation17 + $0x98] sm:$0xff]
    %v981 = vld [vmem:[#allocation17 + $0xa0] sm:$0xff]
    %v982 = vld [vmem:[#allocation17 + $0xa8] sm:$0xff]
    %v983 = vld [vmem:[#allocation17 + $0xb0] sm:$0xff]
    %v984 = vld [vmem:[#allocation17 + $0xb8] sm:$0xff]
    %v985 = vld [vmem:[#allocation17 + $0xc0] sm:$0xff]
    %v986 = vld [vmem:[#allocation17 + $0xc8] sm:$0xff]
    %v987 = vld [vmem:[#allocation17 + $0xd0] sm:$0xff]
    %v988 = vld [vmem:[#allocation17 + $0xd8] sm:$0xff]
    %v989 = vld [vmem:[#allocation17 + $0xe0] sm:$0xff]
    %v990 = vld [vmem:[#allocation17 + $0xe8] sm:$0xff]
    %v991 = vld [vmem:[#allocation17 + $0xf0] sm:$0xff]
    %v992 = vld [vmem:[#allocation17 + $0xf8] sm:$0xff]
    %v993 = vld [vmem:[#allocation17 + $0x100] sm:$0xff]
    %v994 = vld [vmem:[#allocation17 + $0x108] sm:$0xff]
    %v995 = vld [vmem:[#allocation17 + $0x110] sm:$0xff]
    %v996 = vld [vmem:[#allocation17 + $0x118] sm:$0xff]
    %v997 = vld [vmem:[#allocation17 + $0x120] sm:$0xff]
    %v998 = vld [vmem:[#allocation17 + $0x128] sm:$0xff]
    %v999 = vld [vmem:[#allocation17 + $0x130] sm:$0xff]
    %v1000 = vld [vmem:[#allocation17 + $0x138] sm:$0xff]
    %v1001 = vld [vmem:[#allocation17 + $0x140] sm:$0xff]
    %v1002 = vld [vmem:[#allocation17 + $0x148] sm:$0xff]
    %v1003 = vld [vmem:[#allocation17 + $0x150] sm:$0xff]
    %v1004 = vld [vmem:[#allocation17 + $0x158] sm:$0xff]
    %v1005 = vld [vmem:[#allocation17 + $0x160] sm:$0xff]
    %v1006 = vld [vmem:[#allocation17 + $0x168] sm:$0xff]
    %v1007 = vld [vmem:[#allocation17 + $0x170] sm:$0xff]
    %v1008 = vld [vmem:[#allocation17 + $0x178] sm:$0xff]
    %v1009 = vld [vmem:[#allocation17 + $0x180] sm:$0xff]
    %v1010 = vld [vmem:[#allocation17 + $0x188] sm:$0xff]
    %v1011 = vld [vmem:[#allocation17 + $0x190] sm:$0xff]
    %v1012 = vld [vmem:[#allocation17 + $0x198] sm:$0xff]
    %v1013 = vld [vmem:[#allocation17 + $0x1a0] sm:$0xff]
    %v1014 = vld [vmem:[#allocation17 + $0x1a8] sm:$0xff]
    %v1015 = vld [vmem:[#allocation17 + $0x1b0] sm:$0xff]
    %v1016 = vld [vmem:[#allocation17 + $0x1b8] sm:$0xff]
    %v1017 = vld [vmem:[#allocation17 + $0x1c0] sm:$0xff]
    %v1018 = vld [vmem:[#allocation17 + $0x1c8] sm:$0xff]
    %v1019 = vld [vmem:[#allocation17 + $0x1d0] sm:$0xff]
    %v1020 = vld [vmem:[#allocation17 + $0x1d8] sm:$0xff]
    %v1021 = vld [vmem:[#allocation17 + $0x1e0] sm:$0xff]
    %v1022 = vld [vmem:[#allocation17 + $0x1e8] sm:$0xff]
    %v1023 = vld [vmem:[#allocation17 + $0x1f0] sm:$0xff]
    %v1024 = vld [vmem:[#allocation17 + $0x1f8] sm:$0xff]
    %v1025 = vld [vmem:[#allocation19] sm:$0x3]
    %v1027 = vlaneseq
    %v1028 = vshrl.u32 %v1027, 7
    %v1029 = vsub.s32 0, %v1028
    %v1030 = vrot.slane %v1025, %v1029
    %v1031 = vlaneseq
    %v1032 = vshrl.u32 %v1031, 7
    %v1033 = vsub.s32 1, %v1032
    %v1034 = vrot.slane %v1025, %v1033
    %1037 = vmatprep.subr.mxu0 %v962
    %1038 = vmatpush1.msra.mxu0 %v961
    %1039 = vmatprep.subr.mxu0 %v964
    %1040 = vmatpush1.msra.mxu0 %v963
    %1041 = vmatprep.subr.mxu0 %v966
    %1042 = vmatpush1.msra.mxu0 %v965
    %1043 = vmatprep.subr.mxu0 %v968
    %1044 = vmatpush1.msra.mxu0 %v967
    %1045 = vmatprep.subr.mxu0 %v970
    %1046 = vmatpush1.msra.mxu0 %v969
    %1047 = vmatprep.subr.mxu0 %v972
    %1048 = vmatpush1.msra.mxu0 %v971
    %1049 = vmatprep.subr.mxu0 %v974
    %1050 = vmatpush1.msra.mxu0 %v973
    %1051 = vmatprep.subr.mxu0 %v976
    %1052 = vmatpush1.msra.mxu0 %v975
    %1053 = vmatprep.subr.mxu0 %v978
    %1054 = vmatpush1.msra.mxu0 %v977
    %1055 = vmatprep.subr.mxu0 %v980
    %1056 = vmatpush1.msra.mxu0 %v979
    %1057 = vmatprep.subr.mxu0 %v982
    %1058 = vmatpush1.msra.mxu0 %v981
    %1059 = vmatprep.subr.mxu0 %v984
    %1060 = vmatpush1.msra.mxu0 %v983
    %1061 = vmatprep.subr.mxu0 %v986
    %1062 = vmatpush1.msra.mxu0 %v985
    %1063 = vmatprep.subr.mxu0 %v988
    %1064 = vmatpush1.msra.mxu0 %v987
    %1065 = vmatprep.subr.mxu0 %v990
    %1066 = vmatpush1.msra.mxu0 %v989
    %1067 = vmatprep.subr.mxu0 %v992
    %1068 = vmatpush1.msra.mxu0 %v991
    %1069 = vmatprep.subr.mxu0 %v994
    %1070 = vmatpush1.msra.mxu0 %v993
    %1071 = vmatprep.subr.mxu0 %v996
    %1072 = vmatpush1.msra.mxu0 %v995
    %1073 = vmatprep.subr.mxu0 %v998
    %1074 = vmatpush1.msra.mxu0 %v997
    %1075 = vmatprep.subr.mxu0 %v1000
    %1076 = vmatpush1.msra.mxu0 %v999
    %1077 = vmatprep.subr.mxu0 %v1002
    %1078 = vmatpush1.msra.mxu0 %v1001
    %1079 = vmatprep.subr.mxu0 %v1004
    %1080 = vmatpush1.msra.mxu0 %v1003
    %1081 = vmatprep.subr.mxu0 %v1006
    %1082 = vmatpush1.msra.mxu0 %v1005
    %1083 = vmatprep.subr.mxu0 %v1008
    %1084 = vmatpush1.msra.mxu0 %v1007
    %1085 = vmatprep.subr.mxu0 %v1010
    %1086 = vmatpush1.msra.mxu0 %v1009
    %1087 = vmatprep.subr.mxu0 %v1012
    %1088 = vmatpush1.msra.mxu0 %v1011
    %1089 = vmatprep.subr.mxu0 %v1014
    %1090 = vmatpush1.msra.mxu0 %v1013
    %1091 = vmatprep.subr.mxu0 %v1016
    %1092 = vmatpush1.msra.mxu0 %v1015
    %1093 = vmatprep.subr.mxu0 %v1018
    %1094 = vmatpush1.msra.mxu0 %v1017
    %1095 = vmatprep.subr.mxu0 %v1020
    %1096 = vmatpush1.msra.mxu0 %v1019
    %1097 = vmatprep.subr.mxu0 %v1022
    %1098 = vmatpush1.msra.mxu0 %v1021
    %1099 = vmatprep.subr.mxu0 %v1024
    %1100 = vmatpush1.msra.mxu0 %v1023
    %1101 = vmatprep.mubr.f32.mxu0 %v960
    %1102 = vmatmul.mubr.f32.gmra.mrb[0].mxu0 %v959
    %v1103 = vpop.f32.mrb[0].mxu0
    %v1104 = vadd.f32 %v1030, %v1103
    %v1105 = vpop.f32.mrb[0].mxu0
    %v1106 = vadd.f32 %v1034, %v1105
    %1107 = vdwg.mxu0
    %v1108 = vsub.f32 0.0, %v1104
    %v1109 = vsub.f32 0.0, %v1106
    %v1110 = vmul.f32 %v1108, 1.442695
    %v1111 = vpow.pop %v1110
    %v1112 = vmul.f32 %v1109, 1.442695
    %v1113 = vpow.pop %v1112
    %v1114 = vadd.f32 %v1111, 1.0
    %v1115 = vadd.f32 %v1113, 1.0
    %v1116 = vrcp.pop %v1114
    %v1117 = vmul.f32 1.0, %v1116
    %v1118 = vrcp.pop %v1115
    %v1119 = vmul.f32 1.0, %v1118
    %1120 = vst [vmem:[#allocation20] sm:$0xff] %v1117
    %vm1121 = vcmask 523264
    %1122 = vst.msk [vmem:[#allocation20 + $0x8] sm:$0xff] %vm1121, %v1119
    // Predicated region
    $region74: #{autoencoder_forward.1} parent=1 // pred_check
      _
    $region75: #{autoencoder_forward.1} parent=1 // pred_check_branch
      %1124 = sbr.rel (0) target = $region77
    $region76: #{autoencoder_forward.1} parent=1 // pred_region
      %s1126 = ssub.s32 256, 256
      %1127 = vsyncadd [#allocation7], %s1126
      %s1129 = sshll.u32 [#allocation20], 4
      %s1130 = int_to_ptr.vmem [resolvable:$true] %s1129
      %1132 = dma.vmem_to_hbm [thread:$0]  %s1130, 256, %s9, [#allocation7]
    $region77: #{autoencoder_forward.1} parent=1 // pred_fallthru
      _
    // Predicated region
    $region78: #{autoencoder_forward.1} parent=1 // pred_check
      _
    $region79: #{autoencoder_forward.1} parent=1 // pred_check_branch
      %1134 = sbr.rel (0) target = $region81
    $region80: #{autoencoder_forward.1} parent=1 // pred_region
      %1135 = dma.done [#allocation7], 256
    $region81: #{autoencoder_forward.1} parent=1 // pred_fallthru
      _
    %1136 = vsyncpa [#allocation6], 1
    %1137 = vsyncpa [#allocation9], 1
    %1138 = vsyncpa [#allocation12], 1
    %1139 = vsyncpa [#allocation15], 1
    %1140 = vsyncpa [#allocation18], 1
    %1141 = vsyncpa [#allocation7], 1

</llo_original>
